<compile_context>
chip_gen: v6e
topology: v6e:2x2x1
jax: 0.10.0
libtpu: 0.0.40
codegen_flags: <defaults>
</compile_context>

<pallas_src>
import functools

import jax
import jax.numpy as jnp
from jax.experimental import pallas as pl
from jax.experimental.pallas import tpu as pltpu


def mha_kernel(x_ref, wq_ref, bq_ref, wv_ref, bv_ref, wr_ref, br_ref, o_ref,
               *, compute_dtype):
    bt, C, d_k = x_ref.shape
    n_heads, _, head_size = wq_ref.shape
    G = bt * n_heads
    cd = compute_dtype

    x = x_ref[...].astype(cd)                                   # (Bt, C, d_k)
    # Replicate x across heads so every attention op is a single-leading-
    # batch-dim einsum over g = b * n_heads + h (no lane slicing anywhere).
    xh = jnp.broadcast_to(x[:, None], (bt, n_heads, C, d_k)).reshape(G, C, d_k)

    def rep(ref):   # (n_heads, A, B) -> (G, A, B), head-major, replicated per Bt
        w = ref[...].astype(cd)
        return jnp.broadcast_to(w[None], (bt,) + w.shape).reshape((G,) + w.shape[1:])

    wq, wv, wr = rep(wq_ref), rep(wv_ref), rep(wr_ref)
    bq = jnp.broadcast_to(bq_ref[...][None],
                          (bt, n_heads, 1, head_size)).reshape(G, 1, head_size)
    bv = jnp.broadcast_to(bv_ref[...][None],
                          (bt, n_heads, 1, head_size)).reshape(G, 1, head_size)

    # Head-major batched projections; 1/sqrt(d_k) is already folded into
    # wq/bq by the wrapper (d_k**-0.25 on q == k).
    q = jnp.einsum('gcd,gde->gce', xh, wq,
                   preferred_element_type=jnp.float32) + bq      # (G, C, hs)
    v = jnp.einsum('gcd,gde->gce', xh, wv,
                   preferred_element_type=jnp.float32) + bv      # (G, C, hs)
    # Reference module quirk: k = self.query(x), i.e. k == q.

    # Scores contract the last dims of q with itself: no materialized transpose.
    s = jnp.einsum('gqe,gke->gqk', q.astype(cd), q.astype(cd),
                   preferred_element_type=jnp.float32)           # (G, C, C)
    # TODO(synk): optional `mask` argument (masked_fill with -1e9) not wired
    # in; only the reference default path (mask=None) is implemented.
    s = s - jnp.max(s, axis=-1, keepdims=True)
    e = jnp.exp(s)
    denom = jnp.sum(e, axis=-1, keepdims=True)
    p = e * pl.reciprocal(denom, approx=False)   # exact keeps the 1e-4 check

    ctx = jnp.einsum('gqk,gke->gqe', p.astype(cd), v.astype(cd),
                     preferred_element_type=jnp.float32)         # (G, C, hs)

    # res_fc as per-head batched matmul + head-sum (replaces concat + wide fc).
    outs = jnp.einsum('gce,ged->gcd', ctx.astype(cd), wr,
                      preferred_element_type=jnp.float32)        # (G, C, d_k)
    out = outs.reshape(bt, n_heads, C, d_k).sum(axis=1) + br_ref[...]
    o_ref[...] = out.astype(o_ref.dtype)


def _pick_bt(B, C, max_rows=256):
    """Pack batch rows per grid step; keep >= 2 steps when B >= 2 (v7x 2 TCs)."""
    best = 1
    for bt in range(1, B + 1):
        if B % bt:
            continue
        if B >= 2 and B // bt < 2:
            continue
        if bt * C > max_rows:
            continue
        best = bt
    return best


def multihead_attention(x, params, *, compute_dtype=jnp.float32):
    """x: (B, C, d_k) float32. params: dict of per-head (head-major) weights."""
    B, C, d_k = x.shape
    wq, bq = params["wq"], params["bq"]      # (n_heads, d_k, hs), (n_heads, 1, hs)
    wv, bv = params["wv"], params["bv"]      # (n_heads, d_k, hs), (n_heads, 1, hs)
    wr, br = params["wr"], params["br"]      # (n_heads, hs, d_k), (1, d_k)
    n_heads, _, head_size = wq.shape

    # Fold the 1/sqrt(d_k) score scale into the q projection (k == q,
    # so d_k**-0.25 on each side reproduces the reference d_k**-0.5).
    scale = float(d_k) ** -0.25
    wq = wq * scale
    bq = bq * scale

    bt = _pick_bt(B, C)
    grid = (B // bt,)

    kernel = functools.partial(mha_kernel, compute_dtype=compute_dtype)

    # Weights/biases use constant index_maps -> DMA'd once, resident in VMEM
    # for the whole grid.  (pipeline_mode=pl.Buffered(1) would halve their
    # resident VMEM; negligible at these sizes so left at the default.)
    return pl.pallas_call(
        kernel,
        out_shape=jax.ShapeDtypeStruct((B, C, d_k), jnp.float32),
        grid_spec=pltpu.PrefetchScalarGridSpec(
            num_scalar_prefetch=0,
            grid=grid,
            in_specs=[
                pl.BlockSpec((bt, C, d_k), lambda b: (b, 0, 0)),            # x
                pl.BlockSpec((n_heads, d_k, head_size), lambda b: (0, 0, 0)),  # wq
                pl.BlockSpec((n_heads, 1, head_size), lambda b: (0, 0, 0)),    # bq
                pl.BlockSpec((n_heads, d_k, head_size), lambda b: (0, 0, 0)),  # wv
                pl.BlockSpec((n_heads, 1, head_size), lambda b: (0, 0, 0)),    # bv
                pl.BlockSpec((n_heads, head_size, d_k), lambda b: (0, 0, 0)),  # wr
                pl.BlockSpec((1, d_k), lambda b: (0, 0)),                      # br
            ],
            out_specs=pl.BlockSpec((bt, C, d_k), lambda b: (b, 0, 0)),
        ),
        compiler_params=pltpu.CompilerParams(
            dimension_semantics=("parallel",)),
    )(x, wq, bq, wv, bv, wr, br)


def init_params(key, d_k, head_size, n_heads):
    ks = jax.random.split(key, 6)
    scale_in = 1.0 / jnp.sqrt(jnp.float32(d_k))
    scale_res = 1.0 / jnp.sqrt(jnp.float32(n_heads * head_size))
    # Weights stored already transposed to (in, out) form (i.e. torch W.T).
    return {
        "wq": jax.random.normal(ks[0], (n_heads, d_k, head_size), jnp.float32) * scale_in,
        "bq": jax.random.normal(ks[1], (n_heads, 1, head_size), jnp.float32) * scale_in,
        "wv": jax.random.normal(ks[2], (n_heads, d_k, head_size), jnp.float32) * scale_in,
        "bv": jax.random.normal(ks[3], (n_heads, 1, head_size), jnp.float32) * scale_in,
        # res_fc: torch weight (d_k, n_heads*head_size) -> W.T reshaped per head.
        "wr": jax.random.normal(ks[4], (n_heads, head_size, d_k), jnp.float32) * scale_res,
        "br": jax.random.normal(ks[5], (1, d_k), jnp.float32) * scale_res,
    }


def reference_mha(x, params):
    """Pure-JAX reference mirroring the PyTorch forward exactly."""
    B, C, d_k = x.shape
    outs = []
    n_heads = params["wq"].shape[0]
    for h in range(n_heads):
        q = x @ params["wq"][h] + params["bq"][h]
        k = x @ params["wq"][h] + params["bq"][h]   # reference uses query() for k
        v = x @ params["wv"][h] + params["bv"][h]
        score = (q @ jnp.swapaxes(k, -2, -1)) * (d_k ** -0.5)
        prob = jax.nn.softmax(score, axis=-1)
        outs.append(prob @ v)
    heads_concat = jnp.concatenate(outs, axis=-1)   # (B, C, n_heads*head_size)
    wr_full = params["wr"].reshape(-1, d_k)         # (n_heads*head_size, d_k)
    return heads_concat @ wr_full + params["br"][0]


if __name__ == "__main__":
    B, C, d_k = 2, 8, 32        # batch, sequence length, feature dim
    head_size, n_heads = 16, 4

    key = jax.random.PRNGKey(0)
    kx, kp = jax.random.split(key)
    x = jax.random.normal(kx, (B, C, d_k), jnp.float32)
    params = init_params(kp, d_k, head_size, n_heads)

    # Default compute_dtype=f32 preserves exact module semantics; pass
    # compute_dtype=jnp.bfloat16 for bf16 MXU operands / f32 accumulation.
    out = multihead_attention(x, params)
    out = jax.block_until_ready(out)

    ref = reference_mha(x, params)
    assert out.shape == (B, C, d_k)
    assert jnp.allclose(out, ref, atol=1e-4, rtol=1e-4), (
        f"max err {jnp.max(jnp.abs(out - ref))}"
    )
    print("KERNEL_OK")
</pallas_src>

<mosaic_0001>
module attributes {stable_mosaic.version = 11 : i64} {
  func.func @mha_kernel(%arg0: i32, %arg1: memref<1x8x32xf32, #tpu.memory_space<vmem>>, %arg2: memref<4x32x16xf32, #tpu.memory_space<vmem>>, %arg3: memref<4x1x16xf32, #tpu.memory_space<vmem>>, %arg4: memref<4x32x16xf32, #tpu.memory_space<vmem>>, %arg5: memref<4x1x16xf32, #tpu.memory_space<vmem>>, %arg6: memref<4x16x32xf32, #tpu.memory_space<vmem>>, %arg7: memref<1x32xf32, #tpu.memory_space<vmem>>, %arg8: memref<1x8x32xf32, #tpu.memory_space<vmem>>) attributes {dimension_semantics = [#tpu.dimension_semantics<parallel>], iteration_bounds = array<i64: 2>, scalar_prefetch = 0 : i64, scratch_operands = 0 : i64, tpu.core_type = #tpu.core_type<tc>, window_params = [{transform_indices = @transform_0, window_bounds = array<i64: 1, 8, 32>}, {pipeline_mode = #tpu.pipeline_mode<synchronous>, transform_indices = @transform_1, window_bounds = array<i64: 4, 32, 16>}, {pipeline_mode = #tpu.pipeline_mode<synchronous>, transform_indices = @transform_2, window_bounds = array<i64: 4, 1, 16>}, {pipeline_mode = #tpu.pipeline_mode<synchronous>, transform_indices = @transform_3, window_bounds = array<i64: 4, 32, 16>}, {pipeline_mode = #tpu.pipeline_mode<synchronous>, transform_indices = @transform_4, window_bounds = array<i64: 4, 1, 16>}, {pipeline_mode = #tpu.pipeline_mode<synchronous>, transform_indices = @transform_5, window_bounds = array<i64: 4, 16, 32>}, {pipeline_mode = #tpu.pipeline_mode<synchronous>, transform_indices = @transform_6, window_bounds = array<i64: 1, 32>}, {transform_indices = @transform_7, window_bounds = array<i64: 1, 8, 32>}]} {
    %c0 = arith.constant 0 : index
    %c0_0 = arith.constant 0 : index
    %c0_1 = arith.constant 0 : index
    %0 = vector.load %arg1[%c0, %c0_0, %c0_1] : memref<1x8x32xf32, #tpu.memory_space<vmem>>, vector<1x8x32xf32>
    %1 = vector.shape_cast %0 : vector<1x8x32xf32> to vector<1x1x8x32xf32>
    %2 = vector.shape_cast %1 : vector<1x1x8x32xf32> to vector<1x1x8x32xf32>
    %3 = vector.broadcast %2 : vector<1x1x8x32xf32> to vector<1x4x8x32xf32>
    %4 = vector.shape_cast %3 : vector<1x4x8x32xf32> to vector<4x8x32xf32>
    %c0_2 = arith.constant 0 : index
    %c0_3 = arith.constant 0 : index
    %c0_4 = arith.constant 0 : index
    %5 = vector.load %arg2[%c0_2, %c0_3, %c0_4] : memref<4x32x16xf32, #tpu.memory_space<vmem>>, vector<4x32x16xf32>
    %6 = vector.shape_cast %5 : vector<4x32x16xf32> to vector<1x4x32x16xf32>
    %7 = vector.shape_cast %6 : vector<1x4x32x16xf32> to vector<4x32x16xf32>
    %c0_5 = arith.constant 0 : index
    %c0_6 = arith.constant 0 : index
    %c0_7 = arith.constant 0 : index
    %8 = vector.load %arg4[%c0_5, %c0_6, %c0_7] : memref<4x32x16xf32, #tpu.memory_space<vmem>>, vector<4x32x16xf32>
    %9 = vector.shape_cast %8 : vector<4x32x16xf32> to vector<1x4x32x16xf32>
    %10 = vector.shape_cast %9 : vector<1x4x32x16xf32> to vector<4x32x16xf32>
    %c0_8 = arith.constant 0 : index
    %c0_9 = arith.constant 0 : index
    %c0_10 = arith.constant 0 : index
    %11 = vector.load %arg6[%c0_8, %c0_9, %c0_10] : memref<4x16x32xf32, #tpu.memory_space<vmem>>, vector<4x16x32xf32>
    %12 = vector.shape_cast %11 : vector<4x16x32xf32> to vector<1x4x16x32xf32>
    %13 = vector.shape_cast %12 : vector<1x4x16x32xf32> to vector<4x16x32xf32>
    %c0_11 = arith.constant 0 : index
    %c0_12 = arith.constant 0 : index
    %c0_13 = arith.constant 0 : index
    %14 = vector.load %arg3[%c0_11, %c0_12, %c0_13] : memref<4x1x16xf32, #tpu.memory_space<vmem>>, vector<4x1x16xf32>
    %15 = vector.shape_cast %14 : vector<4x1x16xf32> to vector<1x4x1x16xf32>
    %16 = vector.shape_cast %15 : vector<1x4x1x16xf32> to vector<4x1x16xf32>
    %c0_14 = arith.constant 0 : index
    %c0_15 = arith.constant 0 : index
    %c0_16 = arith.constant 0 : index
    %17 = vector.load %arg5[%c0_14, %c0_15, %c0_16] : memref<4x1x16xf32, #tpu.memory_space<vmem>>, vector<4x1x16xf32>
    %18 = vector.shape_cast %17 : vector<4x1x16xf32> to vector<1x4x1x16xf32>
    %19 = vector.shape_cast %18 : vector<1x4x1x16xf32> to vector<4x1x16xf32>
    "tpu.trace_start"() <{level = 10 : i32, message = "gcd,gde->gce"}> : () -> ()
    %cst = arith.constant dense<0.000000e+00> : vector<4x8x16xf32>
    %20 = tpu.matmul %4, %7, %cst {dimension_numbers = #tpu.dot_dimension_numbers<[2], [1], [1], [2], [0, 0, 0, 1, 1, 2], [0], [0]>} : vector<4x8x32xf32>, vector<4x32x16xf32>, vector<4x8x16xf32> -> vector<4x8x16xf32>
    "tpu.trace_stop"() : () -> ()
    %21 = vector.broadcast %16 : vector<4x1x16xf32> to vector<4x8x16xf32>
    %22 = arith.addf %20, %21 : vector<4x8x16xf32>
    "tpu.trace_start"() <{level = 10 : i32, message = "gcd,gde->gce"}> : () -> ()
    %cst_17 = arith.constant dense<0.000000e+00> : vector<4x8x16xf32>
    %23 = tpu.matmul %4, %10, %cst_17 {dimension_numbers = #tpu.dot_dimension_numbers<[2], [1], [1], [2], [0, 0, 0, 1, 1, 2], [0], [0]>} : vector<4x8x32xf32>, vector<4x32x16xf32>, vector<4x8x16xf32> -> vector<4x8x16xf32>
    "tpu.trace_stop"() : () -> ()
    %24 = vector.broadcast %19 : vector<4x1x16xf32> to vector<4x8x16xf32>
    %25 = arith.addf %23, %24 : vector<4x8x16xf32>
    "tpu.trace_start"() <{level = 10 : i32, message = "gqe,gke->gqk"}> : () -> ()
    %cst_18 = arith.constant dense<0.000000e+00> : vector<4x8x8xf32>
    %26 = tpu.matmul %22, %22, %cst_18 {dimension_numbers = #tpu.dot_dimension_numbers<[2], [2], [1], [1], [0, 0, 0, 1, 1, 1], [0], [0]>} : vector<4x8x16xf32>, vector<4x8x16xf32>, vector<4x8x8xf32> -> vector<4x8x8xf32>
    "tpu.trace_stop"() : () -> ()
    %cst_19 = arith.constant dense<0xFF800000> : vector<4x8xf32>
    %27 = vector.multi_reduction <maximumf>, %26, %cst_19 [2] : vector<4x8x8xf32> to vector<4x8xf32>
    %28 = vector.shape_cast %27 : vector<4x8xf32> to vector<4x8x1xf32>
    %29 = vector.broadcast %28 : vector<4x8x1xf32> to vector<4x8x8xf32>
    %30 = arith.subf %26, %29 : vector<4x8x8xf32>
    %31 = math.exp %30 : vector<4x8x8xf32>
    %cst_20 = arith.constant dense<0.000000e+00> : vector<4x8xf32>
    %32 = vector.multi_reduction <add>, %31, %cst_20 [2] : vector<4x8x8xf32> to vector<4x8xf32>
    %33 = vector.shape_cast %32 : vector<4x8xf32> to vector<4x8x1xf32>
    %34 = tpu.reciprocal %33 : vector<4x8x1xf32> -> vector<4x8x1xf32>
    %35 = vector.broadcast %34 : vector<4x8x1xf32> to vector<4x8x8xf32>
    %36 = arith.mulf %31, %35 : vector<4x8x8xf32>
    "tpu.trace_start"() <{level = 10 : i32, message = "gqk,gke->gqe"}> : () -> ()
    %cst_21 = arith.constant dense<0.000000e+00> : vector<4x8x16xf32>
    %37 = tpu.matmul %36, %25, %cst_21 {dimension_numbers = #tpu.dot_dimension_numbers<[2], [1], [1], [2], [0, 0, 0, 1, 1, 2], [0], [0]>} : vector<4x8x8xf32>, vector<4x8x16xf32>, vector<4x8x16xf32> -> vector<4x8x16xf32>
    "tpu.trace_stop"() : () -> ()
    "tpu.trace_start"() <{level = 10 : i32, message = "gce,ged->gcd"}> : () -> ()
    %cst_22 = arith.constant dense<0.000000e+00> : vector<4x8x32xf32>
    %38 = tpu.matmul %37, %13, %cst_22 {dimension_numbers = #tpu.dot_dimension_numbers<[2], [1], [1], [2], [0, 0, 0, 1, 1, 2], [0], [0]>} : vector<4x8x16xf32>, vector<4x16x32xf32>, vector<4x8x32xf32> -> vector<4x8x32xf32>
    "tpu.trace_stop"() : () -> ()
    %39 = vector.shape_cast %38 : vector<4x8x32xf32> to vector<1x4x8x32xf32>
    %cst_23 = arith.constant dense<0.000000e+00> : vector<1x8x32xf32>
    %40 = vector.multi_reduction <add>, %39, %cst_23 [1] : vector<1x4x8x32xf32> to vector<1x8x32xf32>
    %c0_24 = arith.constant 0 : index
    %c0_25 = arith.constant 0 : index
    %41 = vector.load %arg7[%c0_24, %c0_25] : memref<1x32xf32, #tpu.memory_space<vmem>>, vector<1x32xf32>
    %42 = vector.shape_cast %41 : vector<1x32xf32> to vector<1x1x32xf32>
    %43 = vector.broadcast %42 : vector<1x1x32xf32> to vector<1x8x32xf32>
    %44 = arith.addf %40, %43 : vector<1x8x32xf32>
    %c0_26 = arith.constant 0 : index
    %c0_27 = arith.constant 0 : index
    %c0_28 = arith.constant 0 : index
    %45 = vector.load %arg8[%c0_26, %c0_27, %c0_28] : memref<1x8x32xf32, #tpu.memory_space<vmem>>, vector<1x8x32xf32>
    tpu.vector_store %arg8[%c0_26, %c0_27, %c0_28], %44 {strides = array<i32>} : memref<1x8x32xf32, #tpu.memory_space<vmem>>, vector<1x8x32xf32>,
    return
  }
  func.func @transform_0(%arg0: i32) -> (i32, i32, i32) {
    %c0_i32 = arith.constant 0 : i32
    %c0_i32_0 = arith.constant 0 : i32
    %c0_i32_1 = arith.constant 0 : i32
    return %arg0, %c0_i32, %c0_i32_0 : i32, i32, i32
  }
  func.func @transform_1(%arg0: i32) -> (i32, i32, i32) {
    %c0_i32 = arith.constant 0 : i32
    %c0_i32_0 = arith.constant 0 : i32
    %c0_i32_1 = arith.constant 0 : i32
    %c0_i32_2 = arith.constant 0 : i32
    return %c0_i32, %c0_i32_0, %c0_i32_1 : i32, i32, i32
  }
  func.func @transform_2(%arg0: i32) -> (i32, i32, i32) {
    %c0_i32 = arith.constant 0 : i32
    %c0_i32_0 = arith.constant 0 : i32
    %c0_i32_1 = arith.constant 0 : i32
    %c0_i32_2 = arith.constant 0 : i32
    return %c0_i32, %c0_i32_0, %c0_i32_1 : i32, i32, i32
  }
  func.func @transform_3(%arg0: i32) -> (i32, i32, i32) {
    %c0_i32 = arith.constant 0 : i32
    %c0_i32_0 = arith.constant 0 : i32
    %c0_i32_1 = arith.constant 0 : i32
    %c0_i32_2 = arith.constant 0 : i32
    return %c0_i32, %c0_i32_0, %c0_i32_1 : i32, i32, i32
  }
  func.func @transform_4(%arg0: i32) -> (i32, i32, i32) {
    %c0_i32 = arith.constant 0 : i32
    %c0_i32_0 = arith.constant 0 : i32
    %c0_i32_1 = arith.constant 0 : i32
    %c0_i32_2 = arith.constant 0 : i32
    return %c0_i32, %c0_i32_0, %c0_i32_1 : i32, i32, i32
  }
  func.func @transform_5(%arg0: i32) -> (i32, i32, i32) {
    %c0_i32 = arith.constant 0 : i32
    %c0_i32_0 = arith.constant 0 : i32
    %c0_i32_1 = arith.constant 0 : i32
    %c0_i32_2 = arith.constant 0 : i32
    return %c0_i32, %c0_i32_0, %c0_i32_1 : i32, i32, i32
  }
  func.func @transform_6(%arg0: i32) -> (i32, i32) {
    %c0_i32 = arith.constant 0 : i32
    %c0_i32_0 = arith.constant 0 : i32
    %c0_i32_1 = arith.constant 0 : i32
    return %c0_i32, %c0_i32_0 : i32, i32
  }
  func.func @transform_7(%arg0: i32) -> (i32, i32, i32) {
    %c0_i32 = arith.constant 0 : i32
    %c0_i32_0 = arith.constant 0 : i32
    %c0_i32_1 = arith.constant 0 : i32
    return %arg0, %c0_i32, %c0_i32_0 : i32, i32, i32
  }
}

</mosaic_0001>

<llo_original>
// kernel: tpu_custom_call.1
$region0: #{tpu_custom_call.1}
  #allocation0 [shape = 'u32[]', space=smem, size = 0x4, offset = 0x4, fixed_abs, tag = 'smem constant byte address 0x4 - core index']
  #allocation1 [shape = 'u32[144,128]{1,0:T(1,128)}', space=vmem, size = 0x12000, scoped, tag = 'internal scratch']
  %s0 = inlined_call_operand.vmem [shape: f32[2,8,32], index: 0, kind: input, shape index: {}]
  %s1 = inlined_call_operand.vmem [shape: f32[4,32,16], index: 1, kind: input, shape index: {}]
  %s2 = inlined_call_operand.vmem [shape: f32[4,1,16], index: 2, kind: input, shape index: {}]
  %s3 = inlined_call_operand.vmem [shape: f32[4,32,16], index: 3, kind: input, shape index: {}]
  %s4 = inlined_call_operand.vmem [shape: f32[4,1,16], index: 4, kind: input, shape index: {}]
  %s5 = inlined_call_operand.vmem [shape: f32[4,16,32], index: 5, kind: input, shape index: {}]
  %s6 = inlined_call_operand.vmem [shape: f32[1,32], index: 6, kind: input, shape index: {}]
  %s7 = inlined_call_operand.hbm [shape: f32[2,8,32], index: 7, kind: output, shape index: {}]
  %s8 = sld [smem:[#allocation0]]
  $region61: #{tpu_custom_call.1} parent=0
    _
  %s10 = ssub.s32 1, %s8
  %s11 = scalar_select 0, %s10, %s8
  $region1: #{tpu_custom_call.1} parent=0
    #allocation2 [shape = 'u8[8192]{0}', space=vmem, size = 0x2000, scoped, tag = 'output window, operand 0']
    #allocation3 [shape = 's32[2]{0}', space=sflag, size = 0x8, scoped, tag = 'scoped memory for tpu_custom_call.1']
    %12 = vsyncpa [#allocation3], 0
    %s13 = scalar_lea.sflag [#allocation3], 1
    %14 = vsyncpa %s13, 0
    loop: start=0, step=1, limit=4
    $region2: #{tpu_custom_call.1} parent=1 // loop_pre_header
      _
    $region3: #{tpu_custom_call.1} parent=1 // loop_header
      %s16 = sphi 0, %s20
      %p17 = scmp.ge.s32.totalorder %s16, 4
      %s26 = sphi 0, %s28
      %s29 = sphi 0, %s26
      %s30 = sphi 0, %s29
      %s46 = sphi 0, %s30
      %s50 = sphi 0, %s50
      %s52 = sphi 0, %s50
      %s53 = sphi 0, %s52
      %s67 = sphi 0, %s53
      %s71 = sphi 0, %s71
      %s73 = sphi 0, %s71
      %s74 = sphi 0, %s73
      %s88 = sphi 0, %s74
      %s92 = sphi 0, %s92
      %s94 = sphi 0, %s92
      %s95 = sphi 0, %s94
      %s109 = sphi 0, %s95
      %s113 = sphi 0, %s113
      %s115 = sphi 0, %s113
      %s116 = sphi 0, %s115
      %s130 = sphi 0, %s116
      %s134 = sphi 0, %s134
      %s136 = sphi 0, %s134
      %s137 = sphi 0, %s136
      %s151 = sphi 0, %s137
      %s155 = sphi 0, %s155
      %s157 = sphi 0, %s155
      %s158 = sphi 0, %s157
      %s172 = sphi 0, %s158
      %s178 = sphi 0, %s180
      %s181 = sphi 0, %s178
      %s182 = sphi 0, %s181
      %s198 = sphi 0, %s182
    $region4: #{tpu_custom_call.1} parent=1 // loop_header_branch
      %19 = sbr.rel (%p17) target = $region8
    $region5: #{tpu_custom_call.1} parent=1 // loop_body
      %s21 = ssub.s32 %s16, 1
      %s22 = ssub.s32 %s16, 2
      %s23 = sadd.s32 %s16, 1
      %s24 = ssub.s32 %s16, %s23
      %p25 = scmp.eq.s32.totalorder %s24, 0
      %s27 = sadd.s32 %s26, 1
      %s28 = scalar_select %p25, %s26, %s27
      %p31 = pneg %p25
      %p32 = scmp.eq.s32.totalorder %s16, 1
      %p33 = por %p31, %p32
      %p34 = scmp.ne.s32.totalorder %s26, %s29
      %p35 = scmp.eq.s32.totalorder %s16, 0
      %p36 = por %p34, %p35
      %p37 = scmp.ne.s32.totalorder %s26, %s29
      %p38 = scmp.eq.s32.totalorder %s21, 1
      %p39 = por %p37, %p38
      %p40 = scmp.ne.s32.totalorder %s29, %s30
      %p41 = scmp.eq.s32.totalorder %s21, 0
      %p42 = por %p40, %p41
      %p43 = scmp.ne.s32.totalorder %s29, %s30
      %p44 = scmp.eq.s32.totalorder %s22, 1
      %p45 = por %p43, %p44
      %p47 = scmp.ne.s32.totalorder %s30, %s46
      %p48 = scmp.eq.s32.totalorder %s22, 0
      %p49 = por %p47, %p48
      %s51 = sadd.s32 %s50, 1
      %p54 = scmp.eq.s32.totalorder %s16, 1
      %p55 = scmp.ne.s32.totalorder %s50, %s52
      %p56 = scmp.eq.s32.totalorder %s16, 0
      %p57 = por %p55, %p56
      %p58 = scmp.ne.s32.totalorder %s50, %s52
      %p59 = scmp.eq.s32.totalorder %s21, 1
      %p60 = por %p58, %p59
      %p61 = scmp.ne.s32.totalorder %s52, %s53
      %p62 = scmp.eq.s32.totalorder %s21, 0
      %p63 = por %p61, %p62
      %p64 = scmp.ne.s32.totalorder %s52, %s53
      %p65 = scmp.eq.s32.totalorder %s22, 1
      %p66 = por %p64, %p65
      %p68 = scmp.ne.s32.totalorder %s53, %s67
      %p69 = scmp.eq.s32.totalorder %s22, 0
      %p70 = por %p68, %p69
      %s72 = sadd.s32 %s71, 1
      %p75 = scmp.eq.s32.totalorder %s16, 1
      %p76 = scmp.ne.s32.totalorder %s71, %s73
      %p77 = scmp.eq.s32.totalorder %s16, 0
      %p78 = por %p76, %p77
      %p79 = scmp.ne.s32.totalorder %s71, %s73
      %p80 = scmp.eq.s32.totalorder %s21, 1
      %p81 = por %p79, %p80
      %p82 = scmp.ne.s32.totalorder %s73, %s74
      %p83 = scmp.eq.s32.totalorder %s21, 0
      %p84 = por %p82, %p83
      %p85 = scmp.ne.s32.totalorder %s73, %s74
      %p86 = scmp.eq.s32.totalorder %s22, 1
      %p87 = por %p85, %p86
      %p89 = scmp.ne.s32.totalorder %s74, %s88
      %p90 = scmp.eq.s32.totalorder %s22, 0
      %p91 = por %p89, %p90
      %s93 = sadd.s32 %s92, 1
      %p96 = scmp.eq.s32.totalorder %s16, 1
      %p97 = scmp.ne.s32.totalorder %s92, %s94
      %p98 = scmp.eq.s32.totalorder %s16, 0
      %p99 = por %p97, %p98
      %p100 = scmp.ne.s32.totalorder %s92, %s94
      %p101 = scmp.eq.s32.totalorder %s21, 1
      %p102 = por %p100, %p101
      %p103 = scmp.ne.s32.totalorder %s94, %s95
      %p104 = scmp.eq.s32.totalorder %s21, 0
      %p105 = por %p103, %p104
      %p106 = scmp.ne.s32.totalorder %s94, %s95
      %p107 = scmp.eq.s32.totalorder %s22, 1
      %p108 = por %p106, %p107
      %p110 = scmp.ne.s32.totalorder %s95, %s109
      %p111 = scmp.eq.s32.totalorder %s22, 0
      %p112 = por %p110, %p111
      %s114 = sadd.s32 %s113, 1
      %p117 = scmp.eq.s32.totalorder %s16, 1
      %p118 = scmp.ne.s32.totalorder %s113, %s115
      %p119 = scmp.eq.s32.totalorder %s16, 0
      %p120 = por %p118, %p119
      %p121 = scmp.ne.s32.totalorder %s113, %s115
      %p122 = scmp.eq.s32.totalorder %s21, 1
      %p123 = por %p121, %p122
      %p124 = scmp.ne.s32.totalorder %s115, %s116
      %p125 = scmp.eq.s32.totalorder %s21, 0
      %p126 = por %p124, %p125
      %p127 = scmp.ne.s32.totalorder %s115, %s116
      %p128 = scmp.eq.s32.totalorder %s22, 1
      %p129 = por %p127, %p128
      %p131 = scmp.ne.s32.totalorder %s116, %s130
      %p132 = scmp.eq.s32.totalorder %s22, 0
      %p133 = por %p131, %p132
      %s135 = sadd.s32 %s134, 1
      %p138 = scmp.eq.s32.totalorder %s16, 1
      %p139 = scmp.ne.s32.totalorder %s134, %s136
      %p140 = scmp.eq.s32.totalorder %s16, 0
      %p141 = por %p139, %p140
      %p142 = scmp.ne.s32.totalorder %s134, %s136
      %p143 = scmp.eq.s32.totalorder %s21, 1
      %p144 = por %p142, %p143
      %p145 = scmp.ne.s32.totalorder %s136, %s137
      %p146 = scmp.eq.s32.totalorder %s21, 0
      %p147 = por %p145, %p146
      %p148 = scmp.ne.s32.totalorder %s136, %s137
      %p149 = scmp.eq.s32.totalorder %s22, 1
      %p150 = por %p148, %p149
      %p152 = scmp.ne.s32.totalorder %s137, %s151
      %p153 = scmp.eq.s32.totalorder %s22, 0
      %p154 = por %p152, %p153
      %s156 = sadd.s32 %s155, 1
      %p159 = scmp.eq.s32.totalorder %s16, 1
      %p160 = scmp.ne.s32.totalorder %s155, %s157
      %p161 = scmp.eq.s32.totalorder %s16, 0
      %p162 = por %p160, %p161
      %p163 = scmp.ne.s32.totalorder %s155, %s157
      %p164 = scmp.eq.s32.totalorder %s21, 1
      %p165 = por %p163, %p164
      %p166 = scmp.ne.s32.totalorder %s157, %s158
      %p167 = scmp.eq.s32.totalorder %s21, 0
      %p168 = por %p166, %p167
      %p169 = scmp.ne.s32.totalorder %s157, %s158
      %p170 = scmp.eq.s32.totalorder %s22, 1
      %p171 = por %p169, %p170
      %p173 = scmp.ne.s32.totalorder %s158, %s172
      %p174 = scmp.eq.s32.totalorder %s22, 0
      %p175 = por %p173, %p174
      %s176 = ssub.s32 %s16, %s23
      %p177 = scmp.eq.s32.totalorder %s176, 0
      %s179 = sadd.s32 %s178, 1
      %s180 = scalar_select %p177, %s178, %s179
      %p183 = pneg %p177
      %p184 = scmp.eq.s32.totalorder %s16, 1
      %p185 = por %p183, %p184
      %p186 = scmp.ne.s32.totalorder %s178, %s181
      %p187 = scmp.eq.s32.totalorder %s16, 0
      %p188 = por %p186, %p187
      %p189 = scmp.ne.s32.totalorder %s178, %s181
      %p190 = scmp.eq.s32.totalorder %s21, 1
      %p191 = por %p189, %p190
      %p192 = scmp.ne.s32.totalorder %s181, %s182
      %p193 = scmp.eq.s32.totalorder %s21, 0
      %p194 = por %p192, %p193
      %p195 = scmp.ne.s32.totalorder %s181, %s182
      %p196 = scmp.eq.s32.totalorder %s22, 1
      %p197 = por %p195, %p196
      %p199 = scmp.ne.s32.totalorder %s182, %s198
      %p200 = scmp.eq.s32.totalorder %s22, 0
      %p201 = por %p199, %p200
      %p202 = scmp.le.s32.totalorder 1, %s16
      %p203 = scmp.lt.s32.totalorder %s16, 3
      %p204 = pnand %p202, %p203
      %p205 = pneg %p204
      // Predicated region
      $region9: #{tpu_custom_call.1} parent=5 // pred_check
        _
      $region10: #{tpu_custom_call.1} parent=5 // pred_check_branch
        %207 = sbr.rel (%p204) target = $region12
      $region11: #{tpu_custom_call.1} parent=5 // pred_region
        %s208 = ssub.s32 %s16, 1
        // Predicated region
        $region13: #{tpu_custom_call.1} parent=11 // pred_check
          %p209 = pneg %p63
        $region14: #{tpu_custom_call.1} parent=11 // pred_check_branch
          %211 = sbr.rel (%p209) target = $region16
        $region15: #{tpu_custom_call.1} parent=11 // pred_region
          _
        $region16: #{tpu_custom_call.1} parent=11 // pred_fallthru
          _
        // Predicated region
        $region17: #{tpu_custom_call.1} parent=11 // pred_check
          %p212 = pneg %p84
        $region18: #{tpu_custom_call.1} parent=11 // pred_check_branch
          %214 = sbr.rel (%p212) target = $region20
        $region19: #{tpu_custom_call.1} parent=11 // pred_region
          _
        $region20: #{tpu_custom_call.1} parent=11 // pred_fallthru
          _
        // Predicated region
        $region21: #{tpu_custom_call.1} parent=11 // pred_check
          %p215 = pneg %p105
        $region22: #{tpu_custom_call.1} parent=11 // pred_check_branch
          %217 = sbr.rel (%p215) target = $region24
        $region23: #{tpu_custom_call.1} parent=11 // pred_region
          _
        $region24: #{tpu_custom_call.1} parent=11 // pred_fallthru
          _
        // Predicated region
        $region25: #{tpu_custom_call.1} parent=11 // pred_check
          %p218 = pneg %p126
        $region26: #{tpu_custom_call.1} parent=11 // pred_check_branch
          %220 = sbr.rel (%p218) target = $region28
        $region27: #{tpu_custom_call.1} parent=11 // pred_region
          _
        $region28: #{tpu_custom_call.1} parent=11 // pred_fallthru
          _
        // Predicated region
        $region29: #{tpu_custom_call.1} parent=11 // pred_check
          %p221 = pneg %p147
        $region30: #{tpu_custom_call.1} parent=11 // pred_check_branch
          %223 = sbr.rel (%p221) target = $region32
        $region31: #{tpu_custom_call.1} parent=11 // pred_region
          _
        $region32: #{tpu_custom_call.1} parent=11 // pred_fallthru
          _
        // Predicated region
        $region33: #{tpu_custom_call.1} parent=11 // pred_check
          %p224 = pneg %p168
        $region34: #{tpu_custom_call.1} parent=11 // pred_check_branch
          %226 = sbr.rel (%p224) target = $region36
        $region35: #{tpu_custom_call.1} parent=11 // pred_region
          _
        $region36: #{tpu_custom_call.1} parent=11 // pred_fallthru
          _
      $region12: #{tpu_custom_call.1} parent=5 // pred_fallthru
        _
      %p227 = scmp.lt.s32.totalorder %s16, 2
      // Predicated region
      $region37: #{tpu_custom_call.1} parent=5 // pred_check
        %p228 = pneg %p227
      $region38: #{tpu_custom_call.1} parent=5 // pred_check_branch
        %230 = sbr.rel (%p228) target = $region40
      $region39: #{tpu_custom_call.1} parent=5 // pred_region
        // Predicated region
        $region41: #{tpu_custom_call.1} parent=39 // pred_check
          %p231 = pneg %p36
        $region42: #{tpu_custom_call.1} parent=39 // pred_check_branch
          %233 = sbr.rel (%p231) target = $region44
        $region43: #{tpu_custom_call.1} parent=39 // pred_region
          %p234 = scmp.lt.s32.totalorder %s16, 1
          %s235 = scalar_select %p234, %s16, 1
          %s236 = smul.addr %s235, 8
          %s237 = scalar_lea.vmem %s0, %s236
        $region44: #{tpu_custom_call.1} parent=39 // pred_fallthru
          _
      $region40: #{tpu_custom_call.1} parent=5 // pred_fallthru
        _
      %p238 = scmp.le.s32.totalorder 1, %s16
      %p239 = scmp.lt.s32.totalorder %s16, 3
      %p240 = pnand %p238, %p239
      %p241 = pneg %p240
      // Predicated region
      $region45: #{tpu_custom_call.1} parent=5 // pred_check
        _
      $region46: #{tpu_custom_call.1} parent=5 // pred_check_branch
        %243 = sbr.rel (%p240) target = $region48
      $region47: #{tpu_custom_call.1} parent=5 // pred_region
        %s244 = ssub.s32 %s16, 1
        %p245 = scmp.lt.s32.totalorder %s21, 1
        %s246 = scalar_select %p245, %s21, 1
        %s247 = smul.addr %s246, 8
        %s248 = scalar_lea.vmem %s0, %s247
        %p249 = pneg %p42
        %p250 = pneg %p39
        %p251 = pneg %p63
        %p252 = pneg %p60
        %p253 = pneg %p84
        %p254 = pneg %p81
        %p255 = pneg %p105
        %p256 = pneg %p102
        %p257 = pneg %p126
        %p258 = pneg %p123
        %p259 = pneg %p147
        %p260 = pneg %p144
        %p261 = pneg %p168
        %p262 = pneg %p165
        %p263 = pneg %p194
        %p264 = pneg %p191
        %s265 = sand.u32 %s181, 1
        %s266 = scalar_lea.sflag [#allocation3], %s265
        %s267 = sand.u32 %s181, 1
        %s268 = smul.addr %s267, 8
        %s269 = scalar_lea.vmem [#allocation2], %s268
        %p270 = scmp.lt.s32.totalorder %s21, 1
        %s271 = scalar_select %p270, %s21, 1
        %s272 = smul.addr %s271, 8
        %s273 = scalar_lea.vmem %s0, %s272
        %v274 = vld [vmem:[%s273] sm:$0xff]
        %v275 = vld [vmem:[%s1] sm:$0xff]
        %v276 = vld [vmem:[%s1 + $0x8] sm:$0xff]
        %v277 = vld [vmem:[%s1 + $0x10] sm:$0xff]
        %v278 = vld [vmem:[%s1 + $0x18] sm:$0xff]
        %v279 = vld [vmem:[%s1 + $0x20] sm:$0xff]
        %v280 = vld [vmem:[%s1 + $0x28] sm:$0xff]
        %v281 = vld [vmem:[%s1 + $0x30] sm:$0xff]
        %v282 = vld [vmem:[%s1 + $0x38] sm:$0xff]
        %v283 = vld [vmem:[%s1 + $0x40] sm:$0xff]
        %v284 = vld [vmem:[%s1 + $0x48] sm:$0xff]
        %v285 = vld [vmem:[%s1 + $0x50] sm:$0xff]
        %v286 = vld [vmem:[%s1 + $0x58] sm:$0xff]
        %v287 = vld [vmem:[%s1 + $0x60] sm:$0xff]
        %v288 = vld [vmem:[%s1 + $0x68] sm:$0xff]
        %v289 = vld [vmem:[%s1 + $0x70] sm:$0xff]
        %v290 = vld [vmem:[%s1 + $0x78] sm:$0xff]
        %v291 = vld [vmem:[%s3] sm:$0xff]
        %v292 = vld [vmem:[%s3 + $0x8] sm:$0xff]
        %v293 = vld [vmem:[%s3 + $0x10] sm:$0xff]
        %v294 = vld [vmem:[%s3 + $0x18] sm:$0xff]
        %v295 = vld [vmem:[%s3 + $0x20] sm:$0xff]
        %v296 = vld [vmem:[%s3 + $0x28] sm:$0xff]
        %v297 = vld [vmem:[%s3 + $0x30] sm:$0xff]
        %v298 = vld [vmem:[%s3 + $0x38] sm:$0xff]
        %v299 = vld [vmem:[%s3 + $0x40] sm:$0xff]
        %v300 = vld [vmem:[%s3 + $0x48] sm:$0xff]
        %v301 = vld [vmem:[%s3 + $0x50] sm:$0xff]
        %v302 = vld [vmem:[%s3 + $0x58] sm:$0xff]
        %v303 = vld [vmem:[%s3 + $0x60] sm:$0xff]
        %v304 = vld [vmem:[%s3 + $0x68] sm:$0xff]
        %v305 = vld [vmem:[%s3 + $0x70] sm:$0xff]
        %v306 = vld [vmem:[%s3 + $0x78] sm:$0xff]
        %v307 = vld [vmem:[%s5] sm:$0xff]
        %v308 = vld [vmem:[%s5 + $0x8] sm:$0xff]
        %v309 = vld [vmem:[%s5 + $0x10] sm:$0xff]
        %v310 = vld [vmem:[%s5 + $0x18] sm:$0xff]
        %v311 = vld [vmem:[%s5 + $0x20] sm:$0xff]
        %v312 = vld [vmem:[%s5 + $0x28] sm:$0xff]
        %v313 = vld [vmem:[%s5 + $0x30] sm:$0xff]
        %v314 = vld [vmem:[%s5 + $0x38] sm:$0xff]
        %v315 = vld [vmem:[%s2] sm:$0x1]
        %v316 = vld [vmem:[%s2 + $0x1] sm:$0x1]
        %v317 = vld [vmem:[%s2 + $0x2] sm:$0x1]
        %v318 = vld [vmem:[%s2 + $0x3] sm:$0x1]
        %v319 = vld [vmem:[%s4] sm:$0x1]
        %v320 = vld [vmem:[%s4 + $0x1] sm:$0x1]
        %v321 = vld [vmem:[%s4 + $0x2] sm:$0x1]
        %v322 = vld [vmem:[%s4 + $0x3] sm:$0x1]
        %v327 = vlaneseq
        %v328 = vshrl.u32 %v327, 7
        %v329 = vsub.s32 0, %v328
        %v330 = vrot.slane %v315, %v329
        %v331 = vlaneseq
        %v332 = vshrl.u32 %v331, 7
        %v333 = vsub.s32 0, %v332
        %v334 = vrot.slane %v316, %v333
        %v335 = vlaneseq
        %v336 = vshrl.u32 %v335, 7
        %v337 = vsub.s32 0, %v336
        %v338 = vrot.slane %v317, %v337
        %v339 = vlaneseq
        %v340 = vshrl.u32 %v339, 7
        %v341 = vsub.s32 0, %v340
        %v342 = vrot.slane %v318, %v341
        %vm347 = vcmask 261120
        %v349 = vsel %vm347, %v274, 0
        %351 = vmatprep.subr.mxu0 0.0
        %352 = vmatpush1.msra.mxu0 0.0
        %353 = vmatprep.subr.mxu0 0.0
        %354 = vmatpush1.msra.mxu0 0.0
        %355 = vmatprep.subr.mxu0 0.0
        %356 = vmatpush1.msra.mxu0 0.0
        %357 = vmatprep.subr.mxu0 0.0
        %358 = vmatpush1.msra.mxu0 0.0
        %359 = vmatprep.subr.mxu0 0.0
        %360 = vmatpush1.msra.mxu0 0.0
        %361 = vmatprep.subr.mxu0 0.0
        %362 = vmatpush1.msra.mxu0 0.0
        %363 = vmatprep.subr.mxu0 0.0
        %364 = vmatpush1.msra.mxu0 0.0
        %365 = vmatprep.subr.mxu0 0.0
        %366 = vmatpush1.msra.mxu0 0.0
        %367 = vmatprep.subr.mxu0 0.0
        %368 = vmatpush1.msra.mxu0 0.0
        %369 = vmatprep.subr.mxu0 0.0
        %370 = vmatpush1.msra.mxu0 0.0
        %371 = vmatprep.subr.mxu0 0.0
        %372 = vmatpush1.msra.mxu0 0.0
        %373 = vmatprep.subr.mxu0 0.0
        %374 = vmatpush1.msra.mxu0 0.0
        %375 = vmatprep.subr.mxu0 0.0
        %376 = vmatpush1.msra.mxu0 %v278
        %377 = vmatprep.subr.mxu0 0.0
        %378 = vmatpush1.msra.mxu0 %v277
        %379 = vmatprep.subr.mxu0 0.0
        %380 = vmatpush1.msra.mxu0 %v276
        %381 = vmatprep.subr.mxu0 0.0
        %382 = vmatpush1.msra.mxu0 %v275
        %383 = vmatprep.subr.mxu0 0.0
        %384 = vmatpush2.msra.mxu0 0.0
        %385 = vmatprep.subr.mxu0 0.0
        %386 = vmatpush2.msra.mxu0 0.0
        %387 = vmatprep.subr.mxu0 0.0
        %388 = vmatpush2.msra.mxu0 0.0
        %389 = vmatprep.subr.mxu0 0.0
        %390 = vmatpush2.msra.mxu0 0.0
        %391 = vmatprep.subr.mxu0 0.0
        %392 = vmatpush2.msra.mxu0 0.0
        %393 = vmatprep.subr.mxu0 0.0
        %394 = vmatpush2.msra.mxu0 0.0
        %395 = vmatprep.subr.mxu0 0.0
        %396 = vmatpush2.msra.mxu0 0.0
        %397 = vmatprep.subr.mxu0 0.0
        %398 = vmatpush2.msra.mxu0 0.0
        %399 = vmatprep.subr.mxu0 0.0
        %400 = vmatpush2.msra.mxu0 0.0
        %401 = vmatprep.subr.mxu0 0.0
        %402 = vmatpush2.msra.mxu0 0.0
        %403 = vmatprep.subr.mxu0 0.0
        %404 = vmatpush2.msra.mxu0 0.0
        %405 = vmatprep.subr.mxu0 0.0
        %406 = vmatpush2.msra.mxu0 0.0
        %407 = vmatprep.subr.mxu0 0.0
        %408 = vmatpush2.msra.mxu0 0.0
        %409 = vmatprep.subr.mxu0 0.0
        %410 = vmatpush2.msra.mxu0 0.0
        %411 = vmatprep.subr.mxu0 0.0
        %412 = vmatpush2.msra.mxu0 0.0
        %413 = vmatprep.subr.mxu0 0.0
        %414 = vmatpush2.msra.mxu0 0.0
        %415 = vmatprep.mubr.f32.mxu0 0.0
        %416 = vmatmul.mubr.f32.gmra.mxu0 %v349
        %v417 = vpop.f32.mrf.mxu0
        %v418 = vadd.f32 %v330, %v417
        %v419 = vpop.f32.mrf.mxu0
        %420 = vdwg.mxu0
        %421 = vmatprep.subr.mxu0 0.0
        %422 = vmatpush1.msra.mxu0 0.0
        %423 = vmatprep.subr.mxu0 0.0
        %424 = vmatpush1.msra.mxu0 0.0
        %425 = vmatprep.subr.mxu0 0.0
        %426 = vmatpush1.msra.mxu0 0.0
        %427 = vmatprep.subr.mxu0 0.0
        %428 = vmatpush1.msra.mxu0 0.0
        %429 = vmatprep.subr.mxu0 0.0
        %430 = vmatpush1.msra.mxu0 0.0
        %431 = vmatprep.subr.mxu0 0.0
        %432 = vmatpush1.msra.mxu0 0.0
        %433 = vmatprep.subr.mxu0 0.0
        %434 = vmatpush1.msra.mxu0 0.0
        %435 = vmatprep.subr.mxu0 0.0
        %436 = vmatpush1.msra.mxu0 0.0
        %437 = vmatprep.subr.mxu0 0.0
        %438 = vmatpush1.msra.mxu0 0.0
        %439 = vmatprep.subr.mxu0 0.0
        %440 = vmatpush1.msra.mxu0 0.0
        %441 = vmatprep.subr.mxu0 0.0
        %442 = vmatpush1.msra.mxu0 0.0
        %443 = vmatprep.subr.mxu0 0.0
        %444 = vmatpush1.msra.mxu0 0.0
        %445 = vmatprep.subr.mxu0 0.0
        %446 = vmatpush1.msra.mxu0 %v282
        %447 = vmatprep.subr.mxu0 0.0
        %448 = vmatpush1.msra.mxu0 %v281
        %449 = vmatprep.subr.mxu0 0.0
        %450 = vmatpush1.msra.mxu0 %v280
        %451 = vmatprep.subr.mxu0 0.0
        %452 = vmatpush1.msra.mxu0 %v279
        %453 = vmatprep.subr.mxu0 0.0
        %454 = vmatpush2.msra.mxu0 0.0
        %455 = vmatprep.subr.mxu0 0.0
        %456 = vmatpush2.msra.mxu0 0.0
        %457 = vmatprep.subr.mxu0 0.0
        %458 = vmatpush2.msra.mxu0 0.0
        %459 = vmatprep.subr.mxu0 0.0
        %460 = vmatpush2.msra.mxu0 0.0
        %461 = vmatprep.subr.mxu0 0.0
        %462 = vmatpush2.msra.mxu0 0.0
        %463 = vmatprep.subr.mxu0 0.0
        %464 = vmatpush2.msra.mxu0 0.0
        %465 = vmatprep.subr.mxu0 0.0
        %466 = vmatpush2.msra.mxu0 0.0
        %467 = vmatprep.subr.mxu0 0.0
        %468 = vmatpush2.msra.mxu0 0.0
        %469 = vmatprep.subr.mxu0 0.0
        %470 = vmatpush2.msra.mxu0 0.0
        %471 = vmatprep.subr.mxu0 0.0
        %472 = vmatpush2.msra.mxu0 0.0
        %473 = vmatprep.subr.mxu0 0.0
        %474 = vmatpush2.msra.mxu0 0.0
        %475 = vmatprep.subr.mxu0 0.0
        %476 = vmatpush2.msra.mxu0 0.0
        %477 = vmatprep.subr.mxu0 0.0
        %478 = vmatpush2.msra.mxu0 0.0
        %479 = vmatprep.subr.mxu0 0.0
        %480 = vmatpush2.msra.mxu0 0.0
        %481 = vmatprep.subr.mxu0 0.0
        %482 = vmatpush2.msra.mxu0 0.0
        %483 = vmatprep.subr.mxu0 0.0
        %484 = vmatpush2.msra.mxu0 0.0
        %485 = vmatprep.mubr.f32.mxu0 0.0
        %486 = vmatmul.mubr.f32.gmra.mxu0 %v349
        %v487 = vpop.f32.mrf.mxu0
        %v488 = vadd.f32 %v334, %v487
        %v489 = vpop.f32.mrf.mxu0
        %490 = vdwg.mxu0
        %491 = vmatprep.subr.mxu0 0.0
        %492 = vmatpush1.msra.mxu0 0.0
        %493 = vmatprep.subr.mxu0 0.0
        %494 = vmatpush1.msra.mxu0 0.0
        %495 = vmatprep.subr.mxu0 0.0
        %496 = vmatpush1.msra.mxu0 0.0
        %497 = vmatprep.subr.mxu0 0.0
        %498 = vmatpush1.msra.mxu0 0.0
        %499 = vmatprep.subr.mxu0 0.0
        %500 = vmatpush1.msra.mxu0 0.0
        %501 = vmatprep.subr.mxu0 0.0
        %502 = vmatpush1.msra.mxu0 0.0
        %503 = vmatprep.subr.mxu0 0.0
        %504 = vmatpush1.msra.mxu0 0.0
        %505 = vmatprep.subr.mxu0 0.0
        %506 = vmatpush1.msra.mxu0 0.0
        %507 = vmatprep.subr.mxu0 0.0
        %508 = vmatpush1.msra.mxu0 0.0
        %509 = vmatprep.subr.mxu0 0.0
        %510 = vmatpush1.msra.mxu0 0.0
        %511 = vmatprep.subr.mxu0 0.0
        %512 = vmatpush1.msra.mxu0 0.0
        %513 = vmatprep.subr.mxu0 0.0
        %514 = vmatpush1.msra.mxu0 0.0
        %515 = vmatprep.subr.mxu0 0.0
        %516 = vmatpush1.msra.mxu0 %v286
        %517 = vmatprep.subr.mxu0 0.0
        %518 = vmatpush1.msra.mxu0 %v285
        %519 = vmatprep.subr.mxu0 0.0
        %520 = vmatpush1.msra.mxu0 %v284
        %521 = vmatprep.subr.mxu0 0.0
        %522 = vmatpush1.msra.mxu0 %v283
        %523 = vmatprep.subr.mxu0 0.0
        %524 = vmatpush2.msra.mxu0 0.0
        %525 = vmatprep.subr.mxu0 0.0
        %526 = vmatpush2.msra.mxu0 0.0
        %527 = vmatprep.subr.mxu0 0.0
        %528 = vmatpush2.msra.mxu0 0.0
        %529 = vmatprep.subr.mxu0 0.0
        %530 = vmatpush2.msra.mxu0 0.0
        %531 = vmatprep.subr.mxu0 0.0
        %532 = vmatpush2.msra.mxu0 0.0
        %533 = vmatprep.subr.mxu0 0.0
        %534 = vmatpush2.msra.mxu0 0.0
        %535 = vmatprep.subr.mxu0 0.0
        %536 = vmatpush2.msra.mxu0 0.0
        %537 = vmatprep.subr.mxu0 0.0
        %538 = vmatpush2.msra.mxu0 0.0
        %539 = vmatprep.subr.mxu0 0.0
        %540 = vmatpush2.msra.mxu0 0.0
        %541 = vmatprep.subr.mxu0 0.0
        %542 = vmatpush2.msra.mxu0 0.0
        %543 = vmatprep.subr.mxu0 0.0
        %544 = vmatpush2.msra.mxu0 0.0
        %545 = vmatprep.subr.mxu0 0.0
        %546 = vmatpush2.msra.mxu0 0.0
        %547 = vmatprep.subr.mxu0 0.0
        %548 = vmatpush2.msra.mxu0 0.0
        %549 = vmatprep.subr.mxu0 0.0
        %550 = vmatpush2.msra.mxu0 0.0
        %551 = vmatprep.subr.mxu0 0.0
        %552 = vmatpush2.msra.mxu0 0.0
        %553 = vmatprep.subr.mxu0 0.0
        %554 = vmatpush2.msra.mxu0 0.0
        %555 = vmatprep.mubr.f32.mxu0 0.0
        %556 = vmatmul.mubr.f32.gmra.mxu0 %v349
        %v557 = vpop.f32.mrf.mxu0
        %v558 = vadd.f32 %v338, %v557
        %v559 = vpop.f32.mrf.mxu0
        %560 = vdwg.mxu0
        %561 = vmatprep.subr.mxu0 0.0
        %562 = vmatpush1.msra.mxu0 0.0
        %563 = vmatprep.subr.mxu0 0.0
        %564 = vmatpush1.msra.mxu0 0.0
        %565 = vmatprep.subr.mxu0 0.0
        %566 = vmatpush1.msra.mxu0 0.0
        %567 = vmatprep.subr.mxu0 0.0
        %568 = vmatpush1.msra.mxu0 0.0
        %569 = vmatprep.subr.mxu0 0.0
        %570 = vmatpush1.msra.mxu0 0.0
        %571 = vmatprep.subr.mxu0 0.0
        %572 = vmatpush1.msra.mxu0 0.0
        %573 = vmatprep.subr.mxu0 0.0
        %574 = vmatpush1.msra.mxu0 0.0
        %575 = vmatprep.subr.mxu0 0.0
        %576 = vmatpush1.msra.mxu0 0.0
        %577 = vmatprep.subr.mxu0 0.0
        %578 = vmatpush1.msra.mxu0 0.0
        %579 = vmatprep.subr.mxu0 0.0
        %580 = vmatpush1.msra.mxu0 0.0
        %581 = vmatprep.subr.mxu0 0.0
        %582 = vmatpush1.msra.mxu0 0.0
        %583 = vmatprep.subr.mxu0 0.0
        %584 = vmatpush1.msra.mxu0 0.0
        %585 = vmatprep.subr.mxu0 0.0
        %586 = vmatpush1.msra.mxu0 %v290
        %587 = vmatprep.subr.mxu0 0.0
        %588 = vmatpush1.msra.mxu0 %v289
        %589 = vmatprep.subr.mxu0 0.0
        %590 = vmatpush1.msra.mxu0 %v288
        %591 = vmatprep.subr.mxu0 0.0
        %592 = vmatpush1.msra.mxu0 %v287
        %593 = vmatprep.subr.mxu0 0.0
        %594 = vmatpush2.msra.mxu0 0.0
        %595 = vmatprep.subr.mxu0 0.0
        %596 = vmatpush2.msra.mxu0 0.0
        %597 = vmatprep.subr.mxu0 0.0
        %598 = vmatpush2.msra.mxu0 0.0
        %599 = vmatprep.subr.mxu0 0.0
        %600 = vmatpush2.msra.mxu0 0.0
        %601 = vmatprep.subr.mxu0 0.0
        %602 = vmatpush2.msra.mxu0 0.0
        %603 = vmatprep.subr.mxu0 0.0
        %604 = vmatpush2.msra.mxu0 0.0
        %605 = vmatprep.subr.mxu0 0.0
        %606 = vmatpush2.msra.mxu0 0.0
        %607 = vmatprep.subr.mxu0 0.0
        %608 = vmatpush2.msra.mxu0 0.0
        %609 = vmatprep.subr.mxu0 0.0
        %610 = vmatpush2.msra.mxu0 0.0
        %611 = vmatprep.subr.mxu0 0.0
        %612 = vmatpush2.msra.mxu0 0.0
        %613 = vmatprep.subr.mxu0 0.0
        %614 = vmatpush2.msra.mxu0 0.0
        %615 = vmatprep.subr.mxu0 0.0
        %616 = vmatpush2.msra.mxu0 0.0
        %617 = vmatprep.subr.mxu0 0.0
        %618 = vmatpush2.msra.mxu0 0.0
        %619 = vmatprep.subr.mxu0 0.0
        %620 = vmatpush2.msra.mxu0 0.0
        %621 = vmatprep.subr.mxu0 0.0
        %622 = vmatpush2.msra.mxu0 0.0
        %623 = vmatprep.subr.mxu0 0.0
        %624 = vmatpush2.msra.mxu0 0.0
        %625 = vmatprep.mubr.f32.mxu0 0.0
        %626 = vmatmul.mubr.f32.gmra.mxu0 %v349
        %v627 = vpop.f32.mrf.mxu0
        %v628 = vadd.f32 %v342, %v627
        %v629 = vpop.f32.mrf.mxu0
        %630 = vdwg.mxu0
        %v635 = vlaneseq
        %v636 = vshrl.u32 %v635, 7
        %v637 = vsub.s32 0, %v636
        %v638 = vrot.slane %v319, %v637
        %v639 = vlaneseq
        %v640 = vshrl.u32 %v639, 7
        %v641 = vsub.s32 0, %v640
        %v642 = vrot.slane %v320, %v641
        %v643 = vlaneseq
        %v644 = vshrl.u32 %v643, 7
        %v645 = vsub.s32 0, %v644
        %v646 = vrot.slane %v321, %v645
        %v647 = vlaneseq
        %v648 = vshrl.u32 %v647, 7
        %v649 = vsub.s32 0, %v648
        %v650 = vrot.slane %v322, %v649
        %655 = vmatprep.subr.mxu0 0.0
        %656 = vmatpush1.msra.mxu0 0.0
        %657 = vmatprep.subr.mxu0 0.0
        %658 = vmatpush1.msra.mxu0 0.0
        %659 = vmatprep.subr.mxu0 0.0
        %660 = vmatpush1.msra.mxu0 0.0
        %661 = vmatprep.subr.mxu0 0.0
        %662 = vmatpush1.msra.mxu0 0.0
        %663 = vmatprep.subr.mxu0 0.0
        %664 = vmatpush1.msra.mxu0 0.0
        %665 = vmatprep.subr.mxu0 0.0
        %666 = vmatpush1.msra.mxu0 0.0
        %667 = vmatprep.subr.mxu0 0.0
        %668 = vmatpush1.msra.mxu0 0.0
        %669 = vmatprep.subr.mxu0 0.0
        %670 = vmatpush1.msra.mxu0 0.0
        %671 = vmatprep.subr.mxu0 0.0
        %672 = vmatpush1.msra.mxu0 0.0
        %673 = vmatprep.subr.mxu0 0.0
        %674 = vmatpush1.msra.mxu0 0.0
        %675 = vmatprep.subr.mxu0 0.0
        %676 = vmatpush1.msra.mxu0 0.0
        %677 = vmatprep.subr.mxu0 0.0
        %678 = vmatpush1.msra.mxu0 0.0
        %679 = vmatprep.subr.mxu0 0.0
        %680 = vmatpush1.msra.mxu0 %v294
        %681 = vmatprep.subr.mxu0 0.0
        %682 = vmatpush1.msra.mxu0 %v293
        %683 = vmatprep.subr.mxu0 0.0
        %684 = vmatpush1.msra.mxu0 %v292
        %685 = vmatprep.subr.mxu0 0.0
        %686 = vmatpush1.msra.mxu0 %v291
        %687 = vmatprep.subr.mxu0 0.0
        %688 = vmatpush2.msra.mxu0 0.0
        %689 = vmatprep.subr.mxu0 0.0
        %690 = vmatpush2.msra.mxu0 0.0
        %691 = vmatprep.subr.mxu0 0.0
        %692 = vmatpush2.msra.mxu0 0.0
        %693 = vmatprep.subr.mxu0 0.0
        %694 = vmatpush2.msra.mxu0 0.0
        %695 = vmatprep.subr.mxu0 0.0
        %696 = vmatpush2.msra.mxu0 0.0
        %697 = vmatprep.subr.mxu0 0.0
        %698 = vmatpush2.msra.mxu0 0.0
        %699 = vmatprep.subr.mxu0 0.0
        %700 = vmatpush2.msra.mxu0 0.0
        %701 = vmatprep.subr.mxu0 0.0
        %702 = vmatpush2.msra.mxu0 0.0
        %703 = vmatprep.subr.mxu0 0.0
        %704 = vmatpush2.msra.mxu0 0.0
        %705 = vmatprep.subr.mxu0 0.0
        %706 = vmatpush2.msra.mxu0 0.0
        %707 = vmatprep.subr.mxu0 0.0
        %708 = vmatpush2.msra.mxu0 0.0
        %709 = vmatprep.subr.mxu0 0.0
        %710 = vmatpush2.msra.mxu0 0.0
        %711 = vmatprep.subr.mxu0 0.0
        %712 = vmatpush2.msra.mxu0 0.0
        %713 = vmatprep.subr.mxu0 0.0
        %714 = vmatpush2.msra.mxu0 0.0
        %715 = vmatprep.subr.mxu0 0.0
        %716 = vmatpush2.msra.mxu0 0.0
        %717 = vmatprep.subr.mxu0 0.0
        %718 = vmatpush2.msra.mxu0 0.0
        %719 = vmatprep.mubr.f32.mxu0 0.0
        %720 = vmatmul.mubr.f32.gmra.mxu0 %v349
        %v721 = vpop.f32.mrf.mxu0
        %v722 = vadd.f32 %v638, %v721
        %v723 = vpop.f32.mrf.mxu0
        %724 = vdwg.mxu0
        %725 = vmatprep.subr.mxu0 0.0
        %726 = vmatpush1.msra.mxu0 0.0
        %727 = vmatprep.subr.mxu0 0.0
        %728 = vmatpush1.msra.mxu0 0.0
        %729 = vmatprep.subr.mxu0 0.0
        %730 = vmatpush1.msra.mxu0 0.0
        %731 = vmatprep.subr.mxu0 0.0
        %732 = vmatpush1.msra.mxu0 0.0
        %733 = vmatprep.subr.mxu0 0.0
        %734 = vmatpush1.msra.mxu0 0.0
        %735 = vmatprep.subr.mxu0 0.0
        %736 = vmatpush1.msra.mxu0 0.0
        %737 = vmatprep.subr.mxu0 0.0
        %738 = vmatpush1.msra.mxu0 0.0
        %739 = vmatprep.subr.mxu0 0.0
        %740 = vmatpush1.msra.mxu0 0.0
        %741 = vmatprep.subr.mxu0 0.0
        %742 = vmatpush1.msra.mxu0 0.0
        %743 = vmatprep.subr.mxu0 0.0
        %744 = vmatpush1.msra.mxu0 0.0
        %745 = vmatprep.subr.mxu0 0.0
        %746 = vmatpush1.msra.mxu0 0.0
        %747 = vmatprep.subr.mxu0 0.0
        %748 = vmatpush1.msra.mxu0 0.0
        %749 = vmatprep.subr.mxu0 0.0
        %750 = vmatpush1.msra.mxu0 %v298
        %751 = vmatprep.subr.mxu0 0.0
        %752 = vmatpush1.msra.mxu0 %v297
        %753 = vmatprep.subr.mxu0 0.0
        %754 = vmatpush1.msra.mxu0 %v296
        %755 = vmatprep.subr.mxu0 0.0
        %756 = vmatpush1.msra.mxu0 %v295
        %757 = vmatprep.subr.mxu0 0.0
        %758 = vmatpush2.msra.mxu0 0.0
        %759 = vmatprep.subr.mxu0 0.0
        %760 = vmatpush2.msra.mxu0 0.0
        %761 = vmatprep.subr.mxu0 0.0
        %762 = vmatpush2.msra.mxu0 0.0
        %763 = vmatprep.subr.mxu0 0.0
        %764 = vmatpush2.msra.mxu0 0.0
        %765 = vmatprep.subr.mxu0 0.0
        %766 = vmatpush2.msra.mxu0 0.0
        %767 = vmatprep.subr.mxu0 0.0
        %768 = vmatpush2.msra.mxu0 0.0
        %769 = vmatprep.subr.mxu0 0.0
        %770 = vmatpush2.msra.mxu0 0.0
        %771 = vmatprep.subr.mxu0 0.0
        %772 = vmatpush2.msra.mxu0 0.0
        %773 = vmatprep.subr.mxu0 0.0
        %774 = vmatpush2.msra.mxu0 0.0
        %775 = vmatprep.subr.mxu0 0.0
        %776 = vmatpush2.msra.mxu0 0.0
        %777 = vmatprep.subr.mxu0 0.0
        %778 = vmatpush2.msra.mxu0 0.0
        %779 = vmatprep.subr.mxu0 0.0
        %780 = vmatpush2.msra.mxu0 0.0
        %781 = vmatprep.subr.mxu0 0.0
        %782 = vmatpush2.msra.mxu0 0.0
        %783 = vmatprep.subr.mxu0 0.0
        %784 = vmatpush2.msra.mxu0 0.0
        %785 = vmatprep.subr.mxu0 0.0
        %786 = vmatpush2.msra.mxu0 0.0
        %787 = vmatprep.subr.mxu0 0.0
        %788 = vmatpush2.msra.mxu0 0.0
        %789 = vmatprep.mubr.f32.mxu0 0.0
        %790 = vmatmul.mubr.f32.gmra.mxu0 %v349
        %v791 = vpop.f32.mrf.mxu0
        %v792 = vadd.f32 %v642, %v791
        %v793 = vpop.f32.mrf.mxu0
        %794 = vdwg.mxu0
        %795 = vmatprep.subr.mxu0 0.0
        %796 = vmatpush1.msra.mxu0 0.0
        %797 = vmatprep.subr.mxu0 0.0
        %798 = vmatpush1.msra.mxu0 0.0
        %799 = vmatprep.subr.mxu0 0.0
        %800 = vmatpush1.msra.mxu0 0.0
        %801 = vmatprep.subr.mxu0 0.0
        %802 = vmatpush1.msra.mxu0 0.0
        %803 = vmatprep.subr.mxu0 0.0
        %804 = vmatpush1.msra.mxu0 0.0
        %805 = vmatprep.subr.mxu0 0.0
        %806 = vmatpush1.msra.mxu0 0.0
        %807 = vmatprep.subr.mxu0 0.0
        %808 = vmatpush1.msra.mxu0 0.0
        %809 = vmatprep.subr.mxu0 0.0
        %810 = vmatpush1.msra.mxu0 0.0
        %811 = vmatprep.subr.mxu0 0.0
        %812 = vmatpush1.msra.mxu0 0.0
        %813 = vmatprep.subr.mxu0 0.0
        %814 = vmatpush1.msra.mxu0 0.0
        %815 = vmatprep.subr.mxu0 0.0
        %816 = vmatpush1.msra.mxu0 0.0
        %817 = vmatprep.subr.mxu0 0.0
        %818 = vmatpush1.msra.mxu0 0.0
        %819 = vmatprep.subr.mxu0 0.0
        %820 = vmatpush1.msra.mxu0 %v302
        %821 = vmatprep.subr.mxu0 0.0
        %822 = vmatpush1.msra.mxu0 %v301
        %823 = vmatprep.subr.mxu0 0.0
        %824 = vmatpush1.msra.mxu0 %v300
        %825 = vmatprep.subr.mxu0 0.0
        %826 = vmatpush1.msra.mxu0 %v299
        %827 = vmatprep.subr.mxu0 0.0
        %828 = vmatpush2.msra.mxu0 0.0
        %829 = vmatprep.subr.mxu0 0.0
        %830 = vmatpush2.msra.mxu0 0.0
        %831 = vmatprep.subr.mxu0 0.0
        %832 = vmatpush2.msra.mxu0 0.0
        %833 = vmatprep.subr.mxu0 0.0
        %834 = vmatpush2.msra.mxu0 0.0
        %835 = vmatprep.subr.mxu0 0.0
        %836 = vmatpush2.msra.mxu0 0.0
        %837 = vmatprep.subr.mxu0 0.0
        %838 = vmatpush2.msra.mxu0 0.0
        %839 = vmatprep.subr.mxu0 0.0
        %840 = vmatpush2.msra.mxu0 0.0
        %841 = vmatprep.subr.mxu0 0.0
        %842 = vmatpush2.msra.mxu0 0.0
        %843 = vmatprep.subr.mxu0 0.0
        %844 = vmatpush2.msra.mxu0 0.0
        %845 = vmatprep.subr.mxu0 0.0
        %846 = vmatpush2.msra.mxu0 0.0
        %847 = vmatprep.subr.mxu0 0.0
        %848 = vmatpush2.msra.mxu0 0.0
        %849 = vmatprep.subr.mxu0 0.0
        %850 = vmatpush2.msra.mxu0 0.0
        %851 = vmatprep.subr.mxu0 0.0
        %852 = vmatpush2.msra.mxu0 0.0
        %853 = vmatprep.subr.mxu0 0.0
        %854 = vmatpush2.msra.mxu0 0.0
        %855 = vmatprep.subr.mxu0 0.0
        %856 = vmatpush2.msra.mxu0 0.0
        %857 = vmatprep.subr.mxu0 0.0
        %858 = vmatpush2.msra.mxu0 0.0
        %859 = vmatprep.mubr.f32.mxu0 0.0
        %860 = vmatmul.mubr.f32.gmra.mxu0 %v349
        %v861 = vpop.f32.mrf.mxu0
        %v862 = vadd.f32 %v646, %v861
        %v863 = vpop.f32.mrf.mxu0
        %864 = vdwg.mxu0
        %865 = vmatprep.subr.mxu0 0.0
        %866 = vmatpush1.msra.mxu0 0.0
        %867 = vmatprep.subr.mxu0 0.0
        %868 = vmatpush1.msra.mxu0 0.0
        %869 = vmatprep.subr.mxu0 0.0
        %870 = vmatpush1.msra.mxu0 0.0
        %871 = vmatprep.subr.mxu0 0.0
        %872 = vmatpush1.msra.mxu0 0.0
        %873 = vmatprep.subr.mxu0 0.0
        %874 = vmatpush1.msra.mxu0 0.0
        %875 = vmatprep.subr.mxu0 0.0
        %876 = vmatpush1.msra.mxu0 0.0
        %877 = vmatprep.subr.mxu0 0.0
        %878 = vmatpush1.msra.mxu0 0.0
        %879 = vmatprep.subr.mxu0 0.0
        %880 = vmatpush1.msra.mxu0 0.0
        %881 = vmatprep.subr.mxu0 0.0
        %882 = vmatpush1.msra.mxu0 0.0
        %883 = vmatprep.subr.mxu0 0.0
        %884 = vmatpush1.msra.mxu0 0.0
        %885 = vmatprep.subr.mxu0 0.0
        %886 = vmatpush1.msra.mxu0 0.0
        %887 = vmatprep.subr.mxu0 0.0
        %888 = vmatpush1.msra.mxu0 0.0
        %889 = vmatprep.subr.mxu0 0.0
        %890 = vmatpush1.msra.mxu0 %v306
        %891 = vmatprep.subr.mxu0 0.0
        %892 = vmatpush1.msra.mxu0 %v305
        %893 = vmatprep.subr.mxu0 0.0
        %894 = vmatpush1.msra.mxu0 %v304
        %895 = vmatprep.subr.mxu0 0.0
        %896 = vmatpush1.msra.mxu0 %v303
        %897 = vmatprep.subr.mxu0 0.0
        %898 = vmatpush2.msra.mxu0 0.0
        %899 = vmatprep.subr.mxu0 0.0
        %900 = vmatpush2.msra.mxu0 0.0
        %901 = vmatprep.subr.mxu0 0.0
        %902 = vmatpush2.msra.mxu0 0.0
        %903 = vmatprep.subr.mxu0 0.0
        %904 = vmatpush2.msra.mxu0 0.0
        %905 = vmatprep.subr.mxu0 0.0
        %906 = vmatpush2.msra.mxu0 0.0
        %907 = vmatprep.subr.mxu0 0.0
        %908 = vmatpush2.msra.mxu0 0.0
        %909 = vmatprep.subr.mxu0 0.0
        %910 = vmatpush2.msra.mxu0 0.0
        %911 = vmatprep.subr.mxu0 0.0
        %912 = vmatpush2.msra.mxu0 0.0
        %913 = vmatprep.subr.mxu0 0.0
        %914 = vmatpush2.msra.mxu0 0.0
        %915 = vmatprep.subr.mxu0 0.0
        %916 = vmatpush2.msra.mxu0 0.0
        %917 = vmatprep.subr.mxu0 0.0
        %918 = vmatpush2.msra.mxu0 0.0
        %919 = vmatprep.subr.mxu0 0.0
        %920 = vmatpush2.msra.mxu0 0.0
        %921 = vmatprep.subr.mxu0 0.0
        %922 = vmatpush2.msra.mxu0 0.0
        %923 = vmatprep.subr.mxu0 0.0
        %924 = vmatpush2.msra.mxu0 0.0
        %925 = vmatprep.subr.mxu0 0.0
        %926 = vmatpush2.msra.mxu0 0.0
        %927 = vmatprep.subr.mxu0 0.0
        %928 = vmatpush2.msra.mxu0 0.0
        %929 = vmatprep.mubr.f32.mxu0 0.0
        %930 = vmatmul.mubr.f32.gmra.mxu0 %v349
        %v931 = vpop.f32.mrf.mxu0
        %v932 = vadd.f32 %v650, %v931
        %v933 = vpop.f32.mrf.mxu0
        %934 = vdwg.mxu0
        %vm935 = vcmask 130048
        %v937 = vsel %vm935, %v418, 0
        %939 = vmatprep.subr.mxu0 0.0
        %940 = vmatpush1.xpose.msra.mxu0 0.0
        %941 = vmatprep.subr.mxu0 0.0
        %942 = vmatpush1.xpose.msra.mxu0 0.0
        %943 = vmatprep.subr.mxu0 0.0
        %944 = vmatpush1.xpose.msra.mxu0 0.0
        %945 = vmatprep.subr.mxu0 0.0
        %946 = vmatpush1.xpose.msra.mxu0 0.0
        %947 = vmatprep.subr.mxu0 0.0
        %948 = vmatpush1.xpose.msra.mxu0 0.0
        %949 = vmatprep.subr.mxu0 0.0
        %950 = vmatpush1.xpose.msra.mxu0 0.0
        %951 = vmatprep.subr.mxu0 0.0
        %952 = vmatpush1.xpose.msra.mxu0 0.0
        %953 = vmatprep.subr.mxu0 0.0
        %954 = vmatpush1.xpose.msra.mxu0 0.0
        %955 = vmatprep.subr.mxu0 0.0
        %956 = vmatpush1.xpose.msra.mxu0 0.0
        %957 = vmatprep.subr.mxu0 0.0
        %958 = vmatpush1.xpose.msra.mxu0 0.0
        %959 = vmatprep.subr.mxu0 0.0
        %960 = vmatpush1.xpose.msra.mxu0 0.0
        %961 = vmatprep.subr.mxu0 0.0
        %962 = vmatpush1.xpose.msra.mxu0 0.0
        %963 = vmatprep.subr.mxu0 0.0
        %964 = vmatpush1.xpose.msra.mxu0 0.0
        %965 = vmatprep.subr.mxu0 0.0
        %966 = vmatpush1.xpose.msra.mxu0 0.0
        %967 = vmatprep.subr.mxu0 0.0
        %968 = vmatpush1.xpose.msra.mxu0 0.0
        %969 = vmatprep.subr.mxu0 0.0
        %970 = vmatpush1.xpose.msra.mxu0 %v937
        %971 = vmatprep.subr.mxu0 0.0
        %972 = vmatpush2.xpose.msra.mxu0 0.0
        %973 = vmatprep.subr.mxu0 0.0
        %974 = vmatpush2.xpose.msra.mxu0 0.0
        %975 = vmatprep.subr.mxu0 0.0
        %976 = vmatpush2.xpose.msra.mxu0 0.0
        %977 = vmatprep.subr.mxu0 0.0
        %978 = vmatpush2.xpose.msra.mxu0 0.0
        %979 = vmatprep.subr.mxu0 0.0
        %980 = vmatpush2.xpose.msra.mxu0 0.0
        %981 = vmatprep.subr.mxu0 0.0
        %982 = vmatpush2.xpose.msra.mxu0 0.0
        %983 = vmatprep.subr.mxu0 0.0
        %984 = vmatpush2.xpose.msra.mxu0 0.0
        %985 = vmatprep.subr.mxu0 0.0
        %986 = vmatpush2.xpose.msra.mxu0 0.0
        %987 = vmatprep.subr.mxu0 0.0
        %988 = vmatpush2.xpose.msra.mxu0 0.0
        %989 = vmatprep.subr.mxu0 0.0
        %990 = vmatpush2.xpose.msra.mxu0 0.0
        %991 = vmatprep.subr.mxu0 0.0
        %992 = vmatpush2.xpose.msra.mxu0 0.0
        %993 = vmatprep.subr.mxu0 0.0
        %994 = vmatpush2.xpose.msra.mxu0 0.0
        %995 = vmatprep.subr.mxu0 0.0
        %996 = vmatpush2.xpose.msra.mxu0 0.0
        %997 = vmatprep.subr.mxu0 0.0
        %998 = vmatpush2.xpose.msra.mxu0 0.0
        %999 = vmatprep.subr.mxu0 0.0
        %1000 = vmatpush2.xpose.msra.mxu0 0.0
        %1001 = vmatprep.subr.mxu0 0.0
        %1002 = vmatpush2.xpose.msra.mxu0 0.0
        %1003 = vmatprep.mubr.f32.mxu0 0.0
        %1004 = vmatmul.mubr.f32.gmra.mxu0 %v937
        %v1005 = vpop.f32.mrf.mxu0
        %v1006 = vadd.f32 0.0, %v1005
        %v1007 = vpop.f32.mrf.mxu0
        %1008 = vdwg.mxu0
        %v1010 = vsel %vm935, %v488, 0
        %1012 = vmatprep.subr.mxu0 0.0
        %1013 = vmatpush1.xpose.msra.mxu0 0.0
        %1014 = vmatprep.subr.mxu0 0.0
        %1015 = vmatpush1.xpose.msra.mxu0 0.0
        %1016 = vmatprep.subr.mxu0 0.0
        %1017 = vmatpush1.xpose.msra.mxu0 0.0
        %1018 = vmatprep.subr.mxu0 0.0
        %1019 = vmatpush1.xpose.msra.mxu0 0.0
        %1020 = vmatprep.subr.mxu0 0.0
        %1021 = vmatpush1.xpose.msra.mxu0 0.0
        %1022 = vmatprep.subr.mxu0 0.0
        %1023 = vmatpush1.xpose.msra.mxu0 0.0
        %1024 = vmatprep.subr.mxu0 0.0
        %1025 = vmatpush1.xpose.msra.mxu0 0.0
        %1026 = vmatprep.subr.mxu0 0.0
        %1027 = vmatpush1.xpose.msra.mxu0 0.0
        %1028 = vmatprep.subr.mxu0 0.0
        %1029 = vmatpush1.xpose.msra.mxu0 0.0
        %1030 = vmatprep.subr.mxu0 0.0
        %1031 = vmatpush1.xpose.msra.mxu0 0.0
        %1032 = vmatprep.subr.mxu0 0.0
        %1033 = vmatpush1.xpose.msra.mxu0 0.0
        %1034 = vmatprep.subr.mxu0 0.0
        %1035 = vmatpush1.xpose.msra.mxu0 0.0
        %1036 = vmatprep.subr.mxu0 0.0
        %1037 = vmatpush1.xpose.msra.mxu0 0.0
        %1038 = vmatprep.subr.mxu0 0.0
        %1039 = vmatpush1.xpose.msra.mxu0 0.0
        %1040 = vmatprep.subr.mxu0 0.0
        %1041 = vmatpush1.xpose.msra.mxu0 0.0
        %1042 = vmatprep.subr.mxu0 0.0
        %1043 = vmatpush1.xpose.msra.mxu0 %v1010
        %1044 = vmatprep.subr.mxu0 0.0
        %1045 = vmatpush2.xpose.msra.mxu0 0.0
        %1046 = vmatprep.subr.mxu0 0.0
        %1047 = vmatpush2.xpose.msra.mxu0 0.0
        %1048 = vmatprep.subr.mxu0 0.0
        %1049 = vmatpush2.xpose.msra.mxu0 0.0
        %1050 = vmatprep.subr.mxu0 0.0
        %1051 = vmatpush2.xpose.msra.mxu0 0.0
        %1052 = vmatprep.subr.mxu0 0.0
        %1053 = vmatpush2.xpose.msra.mxu0 0.0
        %1054 = vmatprep.subr.mxu0 0.0
        %1055 = vmatpush2.xpose.msra.mxu0 0.0
        %1056 = vmatprep.subr.mxu0 0.0
        %1057 = vmatpush2.xpose.msra.mxu0 0.0
        %1058 = vmatprep.subr.mxu0 0.0
        %1059 = vmatpush2.xpose.msra.mxu0 0.0
        %1060 = vmatprep.subr.mxu0 0.0
        %1061 = vmatpush2.xpose.msra.mxu0 0.0
        %1062 = vmatprep.subr.mxu0 0.0
        %1063 = vmatpush2.xpose.msra.mxu0 0.0
        %1064 = vmatprep.subr.mxu0 0.0
        %1065 = vmatpush2.xpose.msra.mxu0 0.0
        %1066 = vmatprep.subr.mxu0 0.0
        %1067 = vmatpush2.xpose.msra.mxu0 0.0
        %1068 = vmatprep.subr.mxu0 0.0
        %1069 = vmatpush2.xpose.msra.mxu0 0.0
        %1070 = vmatprep.subr.mxu0 0.0
        %1071 = vmatpush2.xpose.msra.mxu0 0.0
        %1072 = vmatprep.subr.mxu0 0.0
        %1073 = vmatpush2.xpose.msra.mxu0 0.0
        %1074 = vmatprep.subr.mxu0 0.0
        %1075 = vmatpush2.xpose.msra.mxu0 0.0
        %1076 = vmatprep.mubr.f32.mxu0 0.0
        %1077 = vmatmul.mubr.f32.gmra.mxu0 %v1010
        %v1078 = vpop.f32.mrf.mxu0
        %v1079 = vadd.f32 0.0, %v1078
        %v1080 = vpop.f32.mrf.mxu0
        %1081 = vdwg.mxu0
        %v1083 = vsel %vm935, %v558, 0
        %1085 = vmatprep.subr.mxu0 0.0
        %1086 = vmatpush1.xpose.msra.mxu0 0.0
        %1087 = vmatprep.subr.mxu0 0.0
        %1088 = vmatpush1.xpose.msra.mxu0 0.0
        %1089 = vmatprep.subr.mxu0 0.0
        %1090 = vmatpush1.xpose.msra.mxu0 0.0
        %1091 = vmatprep.subr.mxu0 0.0
        %1092 = vmatpush1.xpose.msra.mxu0 0.0
        %1093 = vmatprep.subr.mxu0 0.0
        %1094 = vmatpush1.xpose.msra.mxu0 0.0
        %1095 = vmatprep.subr.mxu0 0.0
        %1096 = vmatpush1.xpose.msra.mxu0 0.0
        %1097 = vmatprep.subr.mxu0 0.0
        %1098 = vmatpush1.xpose.msra.mxu0 0.0
        %1099 = vmatprep.subr.mxu0 0.0
        %1100 = vmatpush1.xpose.msra.mxu0 0.0
        %1101 = vmatprep.subr.mxu0 0.0
        %1102 = vmatpush1.xpose.msra.mxu0 0.0
        %1103 = vmatprep.subr.mxu0 0.0
        %1104 = vmatpush1.xpose.msra.mxu0 0.0
        %1105 = vmatprep.subr.mxu0 0.0
        %1106 = vmatpush1.xpose.msra.mxu0 0.0
        %1107 = vmatprep.subr.mxu0 0.0
        %1108 = vmatpush1.xpose.msra.mxu0 0.0
        %1109 = vmatprep.subr.mxu0 0.0
        %1110 = vmatpush1.xpose.msra.mxu0 0.0
        %1111 = vmatprep.subr.mxu0 0.0
        %1112 = vmatpush1.xpose.msra.mxu0 0.0
        %1113 = vmatprep.subr.mxu0 0.0
        %1114 = vmatpush1.xpose.msra.mxu0 0.0
        %1115 = vmatprep.subr.mxu0 0.0
        %1116 = vmatpush1.xpose.msra.mxu0 %v1083
        %1117 = vmatprep.subr.mxu0 0.0
        %1118 = vmatpush2.xpose.msra.mxu0 0.0
        %1119 = vmatprep.subr.mxu0 0.0
        %1120 = vmatpush2.xpose.msra.mxu0 0.0
        %1121 = vmatprep.subr.mxu0 0.0
        %1122 = vmatpush2.xpose.msra.mxu0 0.0
        %1123 = vmatprep.subr.mxu0 0.0
        %1124 = vmatpush2.xpose.msra.mxu0 0.0
        %1125 = vmatprep.subr.mxu0 0.0
        %1126 = vmatpush2.xpose.msra.mxu0 0.0
        %1127 = vmatprep.subr.mxu0 0.0
        %1128 = vmatpush2.xpose.msra.mxu0 0.0
        %1129 = vmatprep.subr.mxu0 0.0
        %1130 = vmatpush2.xpose.msra.mxu0 0.0
        %1131 = vmatprep.subr.mxu0 0.0
        %1132 = vmatpush2.xpose.msra.mxu0 0.0
        %1133 = vmatprep.subr.mxu0 0.0
        %1134 = vmatpush2.xpose.msra.mxu0 0.0
        %1135 = vmatprep.subr.mxu0 0.0
        %1136 = vmatpush2.xpose.msra.mxu0 0.0
        %1137 = vmatprep.subr.mxu0 0.0
        %1138 = vmatpush2.xpose.msra.mxu0 0.0
        %1139 = vmatprep.subr.mxu0 0.0
        %1140 = vmatpush2.xpose.msra.mxu0 0.0
        %1141 = vmatprep.subr.mxu0 0.0
        %1142 = vmatpush2.xpose.msra.mxu0 0.0
        %1143 = vmatprep.subr.mxu0 0.0
        %1144 = vmatpush2.xpose.msra.mxu0 0.0
        %1145 = vmatprep.subr.mxu0 0.0
        %1146 = vmatpush2.xpose.msra.mxu0 0.0
        %1147 = vmatprep.subr.mxu0 0.0
        %1148 = vmatpush2.xpose.msra.mxu0 0.0
        %1149 = vmatprep.mubr.f32.mxu0 0.0
        %1150 = vmatmul.mubr.f32.gmra.mxu0 %v1083
        %v1151 = vpop.f32.mrf.mxu0
        %v1152 = vadd.f32 0.0, %v1151
        %v1153 = vpop.f32.mrf.mxu0
        %1154 = vdwg.mxu0
        %v1156 = vsel %vm935, %v628, 0
        %1158 = vmatprep.subr.mxu0 0.0
        %1159 = vmatpush1.xpose.msra.mxu0 0.0
        %1160 = vmatprep.subr.mxu0 0.0
        %1161 = vmatpush1.xpose.msra.mxu0 0.0
        %1162 = vmatprep.subr.mxu0 0.0
        %1163 = vmatpush1.xpose.msra.mxu0 0.0
        %1164 = vmatprep.subr.mxu0 0.0
        %1165 = vmatpush1.xpose.msra.mxu0 0.0
        %1166 = vmatprep.subr.mxu0 0.0
        %1167 = vmatpush1.xpose.msra.mxu0 0.0
        %1168 = vmatprep.subr.mxu0 0.0
        %1169 = vmatpush1.xpose.msra.mxu0 0.0
        %1170 = vmatprep.subr.mxu0 0.0
        %1171 = vmatpush1.xpose.msra.mxu0 0.0
        %1172 = vmatprep.subr.mxu0 0.0
        %1173 = vmatpush1.xpose.msra.mxu0 0.0
        %1174 = vmatprep.subr.mxu0 0.0
        %1175 = vmatpush1.xpose.msra.mxu0 0.0
        %1176 = vmatprep.subr.mxu0 0.0
        %1177 = vmatpush1.xpose.msra.mxu0 0.0
        %1178 = vmatprep.subr.mxu0 0.0
        %1179 = vmatpush1.xpose.msra.mxu0 0.0
        %1180 = vmatprep.subr.mxu0 0.0
        %1181 = vmatpush1.xpose.msra.mxu0 0.0
        %1182 = vmatprep.subr.mxu0 0.0
        %1183 = vmatpush1.xpose.msra.mxu0 0.0
        %1184 = vmatprep.subr.mxu0 0.0
        %1185 = vmatpush1.xpose.msra.mxu0 0.0
        %1186 = vmatprep.subr.mxu0 0.0
        %1187 = vmatpush1.xpose.msra.mxu0 0.0
        %1188 = vmatprep.subr.mxu0 0.0
        %1189 = vmatpush1.xpose.msra.mxu0 %v1156
        %1190 = vmatprep.subr.mxu0 0.0
        %1191 = vmatpush2.xpose.msra.mxu0 0.0
        %1192 = vmatprep.subr.mxu0 0.0
        %1193 = vmatpush2.xpose.msra.mxu0 0.0
        %1194 = vmatprep.subr.mxu0 0.0
        %1195 = vmatpush2.xpose.msra.mxu0 0.0
        %1196 = vmatprep.subr.mxu0 0.0
        %1197 = vmatpush2.xpose.msra.mxu0 0.0
        %1198 = vmatprep.subr.mxu0 0.0
        %1199 = vmatpush2.xpose.msra.mxu0 0.0
        %1200 = vmatprep.subr.mxu0 0.0
        %1201 = vmatpush2.xpose.msra.mxu0 0.0
        %1202 = vmatprep.subr.mxu0 0.0
        %1203 = vmatpush2.xpose.msra.mxu0 0.0
        %1204 = vmatprep.subr.mxu0 0.0
        %1205 = vmatpush2.xpose.msra.mxu0 0.0
        %1206 = vmatprep.subr.mxu0 0.0
        %1207 = vmatpush2.xpose.msra.mxu0 0.0
        %1208 = vmatprep.subr.mxu0 0.0
        %1209 = vmatpush2.xpose.msra.mxu0 0.0
        %1210 = vmatprep.subr.mxu0 0.0
        %1211 = vmatpush2.xpose.msra.mxu0 0.0
        %1212 = vmatprep.subr.mxu0 0.0
        %1213 = vmatpush2.xpose.msra.mxu0 0.0
        %1214 = vmatprep.subr.mxu0 0.0
        %1215 = vmatpush2.xpose.msra.mxu0 0.0
        %1216 = vmatprep.subr.mxu0 0.0
        %1217 = vmatpush2.xpose.msra.mxu0 0.0
        %1218 = vmatprep.subr.mxu0 0.0
        %1219 = vmatpush2.xpose.msra.mxu0 0.0
        %1220 = vmatprep.subr.mxu0 0.0
        %1221 = vmatpush2.xpose.msra.mxu0 0.0
        %1222 = vmatprep.mubr.f32.mxu0 0.0
        %1223 = vmatmul.mubr.f32.gmra.mxu0 %v1156
        %v1224 = vpop.f32.mrf.mxu0
        %v1225 = vadd.f32 0.0, %v1224
        %v1226 = vpop.f32.mrf.mxu0
        %1227 = vdwg.mxu0
        %vm1228 = vcmask 64512
        %v1229 = vsel %vm1228, %v1006, -inf
        %1230 = vmax.xlane.f32.xlu0 %v1229
        %v1231 = vpop.xlane.xlu0 %1230
        %v1232 = vsel %vm1228, %v1079, -inf
        %1233 = vmax.xlane.f32.xlu0 %v1232
        %v1234 = vpop.xlane.xlu0 %1233
        %v1235 = vsel %vm1228, %v1152, -inf
        %1236 = vmax.xlane.f32.xlu0 %v1235
        %v1237 = vpop.xlane.xlu0 %1236
        %v1238 = vsel %vm1228, %v1225, -inf
        %1239 = vmax.xlane.f32.xlu0 %v1238
        %v1240 = vpop.xlane.xlu0 %1239
        %v1241 = vsub.f32 %v1006, %v1231
        %v1242 = vsub.f32 %v1079, %v1234
        %v1243 = vsub.f32 %v1152, %v1237
        %v1244 = vsub.f32 %v1225, %v1240
        %v1245 = vmul.f32 %v1241, 1.442695
        %v1246 = vpow.pop %v1245
        %v1247 = vmul.f32 %v1242, 1.442695
        %v1248 = vpow.pop %v1247
        %v1249 = vmul.f32 %v1243, 1.442695
        %v1250 = vpow.pop %v1249
        %v1251 = vmul.f32 %v1244, 1.442695
        %v1252 = vpow.pop %v1251
        %v1253 = vsel %vm1228, %v1246, 0.0
        %1254 = vadd.xlane.f32.xlu0 %v1253
        %v1255 = vpop.xlane.xlu0 %1254
        %v1256 = vsel %vm1228, %v1248, 0.0
        %1257 = vadd.xlane.f32.xlu0 %v1256
        %v1258 = vpop.xlane.xlu0 %1257
        %v1259 = vsel %vm1228, %v1250, 0.0
        %1260 = vadd.xlane.f32.xlu0 %v1259
        %v1261 = vpop.xlane.xlu0 %1260
        %v1262 = vsel %vm1228, %v1252, 0.0
        %1263 = vadd.xlane.f32.xlu0 %v1262
        %v1264 = vpop.xlane.xlu0 %1263
        %v1265 = vrcp.pop %v1255
        %v1266 = vrcp.pop %v1258
        %v1267 = vrcp.pop %v1261
        %v1268 = vrcp.pop %v1264
        %v1269 = vmul.f32 %v1246, %v1265
        %v1270 = vmul.f32 %v1248, %v1266
        %v1271 = vmul.f32 %v1250, %v1267
        %v1272 = vmul.f32 %v1252, %v1268
        %v1274 = vsel %vm1228, %v1269, 0
        %1276 = vmatprep.subr.mxu0 0.0
        %1277 = vmatpush1.msra.mxu0 0.0
        %1278 = vmatprep.subr.mxu0 0.0
        %1279 = vmatpush1.msra.mxu0 0.0
        %1280 = vmatprep.subr.mxu0 0.0
        %1281 = vmatpush1.msra.mxu0 0.0
        %1282 = vmatprep.subr.mxu0 0.0
        %1283 = vmatpush1.msra.mxu0 0.0
        %1284 = vmatprep.subr.mxu0 0.0
        %1285 = vmatpush1.msra.mxu0 0.0
        %1286 = vmatprep.subr.mxu0 0.0
        %1287 = vmatpush1.msra.mxu0 0.0
        %1288 = vmatprep.subr.mxu0 0.0
        %1289 = vmatpush1.msra.mxu0 0.0
        %1290 = vmatprep.subr.mxu0 0.0
        %1291 = vmatpush1.msra.mxu0 0.0
        %1292 = vmatprep.subr.mxu0 0.0
        %1293 = vmatpush1.msra.mxu0 0.0
        %1294 = vmatprep.subr.mxu0 0.0
        %1295 = vmatpush1.msra.mxu0 0.0
        %1296 = vmatprep.subr.mxu0 0.0
        %1297 = vmatpush1.msra.mxu0 0.0
        %1298 = vmatprep.subr.mxu0 0.0
        %1299 = vmatpush1.msra.mxu0 0.0
        %1300 = vmatprep.subr.mxu0 0.0
        %1301 = vmatpush1.msra.mxu0 0.0
        %1302 = vmatprep.subr.mxu0 0.0
        %1303 = vmatpush1.msra.mxu0 0.0
        %1304 = vmatprep.subr.mxu0 0.0
        %1305 = vmatpush1.msra.mxu0 0.0
        %1306 = vmatprep.subr.mxu0 0.0
        %1307 = vmatpush1.msra.mxu0 %v722
        %1308 = vmatprep.subr.mxu0 0.0
        %1309 = vmatpush2.msra.mxu0 0.0
        %1310 = vmatprep.subr.mxu0 0.0
        %1311 = vmatpush2.msra.mxu0 0.0
        %1312 = vmatprep.subr.mxu0 0.0
        %1313 = vmatpush2.msra.mxu0 0.0
        %1314 = vmatprep.subr.mxu0 0.0
        %1315 = vmatpush2.msra.mxu0 0.0
        %1316 = vmatprep.subr.mxu0 0.0
        %1317 = vmatpush2.msra.mxu0 0.0
        %1318 = vmatprep.subr.mxu0 0.0
        %1319 = vmatpush2.msra.mxu0 0.0
        %1320 = vmatprep.subr.mxu0 0.0
        %1321 = vmatpush2.msra.mxu0 0.0
        %1322 = vmatprep.subr.mxu0 0.0
        %1323 = vmatpush2.msra.mxu0 0.0
        %1324 = vmatprep.subr.mxu0 0.0
        %1325 = vmatpush2.msra.mxu0 0.0
        %1326 = vmatprep.subr.mxu0 0.0
        %1327 = vmatpush2.msra.mxu0 0.0
        %1328 = vmatprep.subr.mxu0 0.0
        %1329 = vmatpush2.msra.mxu0 0.0
        %1330 = vmatprep.subr.mxu0 0.0
        %1331 = vmatpush2.msra.mxu0 0.0
        %1332 = vmatprep.subr.mxu0 0.0
        %1333 = vmatpush2.msra.mxu0 0.0
        %1334 = vmatprep.subr.mxu0 0.0
        %1335 = vmatpush2.msra.mxu0 0.0
        %1336 = vmatprep.subr.mxu0 0.0
        %1337 = vmatpush2.msra.mxu0 0.0
        %1338 = vmatprep.subr.mxu0 0.0
        %1339 = vmatpush2.msra.mxu0 0.0
        %1340 = vmatprep.mubr.f32.mxu0 0.0
        %1341 = vmatmul.mubr.f32.gmra.mxu0 %v1274
        %v1342 = vpop.f32.mrf.mxu0
        %v1343 = vadd.f32 0.0, %v1342
        %v1344 = vpop.f32.mrf.mxu0
        %1345 = vdwg.mxu0
        %v1347 = vsel %vm1228, %v1270, 0
        %1349 = vmatprep.subr.mxu0 0.0
        %1350 = vmatpush1.msra.mxu0 0.0
        %1351 = vmatprep.subr.mxu0 0.0
        %1352 = vmatpush1.msra.mxu0 0.0
        %1353 = vmatprep.subr.mxu0 0.0
        %1354 = vmatpush1.msra.mxu0 0.0
        %1355 = vmatprep.subr.mxu0 0.0
        %1356 = vmatpush1.msra.mxu0 0.0
        %1357 = vmatprep.subr.mxu0 0.0
        %1358 = vmatpush1.msra.mxu0 0.0
        %1359 = vmatprep.subr.mxu0 0.0
        %1360 = vmatpush1.msra.mxu0 0.0
        %1361 = vmatprep.subr.mxu0 0.0
        %1362 = vmatpush1.msra.mxu0 0.0
        %1363 = vmatprep.subr.mxu0 0.0
        %1364 = vmatpush1.msra.mxu0 0.0
        %1365 = vmatprep.subr.mxu0 0.0
        %1366 = vmatpush1.msra.mxu0 0.0
        %1367 = vmatprep.subr.mxu0 0.0
        %1368 = vmatpush1.msra.mxu0 0.0
        %1369 = vmatprep.subr.mxu0 0.0
        %1370 = vmatpush1.msra.mxu0 0.0
        %1371 = vmatprep.subr.mxu0 0.0
        %1372 = vmatpush1.msra.mxu0 0.0
        %1373 = vmatprep.subr.mxu0 0.0
        %1374 = vmatpush1.msra.mxu0 0.0
        %1375 = vmatprep.subr.mxu0 0.0
        %1376 = vmatpush1.msra.mxu0 0.0
        %1377 = vmatprep.subr.mxu0 0.0
        %1378 = vmatpush1.msra.mxu0 0.0
        %1379 = vmatprep.subr.mxu0 0.0
        %1380 = vmatpush1.msra.mxu0 %v792
        %1381 = vmatprep.subr.mxu0 0.0
        %1382 = vmatpush2.msra.mxu0 0.0
        %1383 = vmatprep.subr.mxu0 0.0
        %1384 = vmatpush2.msra.mxu0 0.0
        %1385 = vmatprep.subr.mxu0 0.0
        %1386 = vmatpush2.msra.mxu0 0.0
        %1387 = vmatprep.subr.mxu0 0.0
        %1388 = vmatpush2.msra.mxu0 0.0
        %1389 = vmatprep.subr.mxu0 0.0
        %1390 = vmatpush2.msra.mxu0 0.0
        %1391 = vmatprep.subr.mxu0 0.0
        %1392 = vmatpush2.msra.mxu0 0.0
        %1393 = vmatprep.subr.mxu0 0.0
        %1394 = vmatpush2.msra.mxu0 0.0
        %1395 = vmatprep.subr.mxu0 0.0
        %1396 = vmatpush2.msra.mxu0 0.0
        %1397 = vmatprep.subr.mxu0 0.0
        %1398 = vmatpush2.msra.mxu0 0.0
        %1399 = vmatprep.subr.mxu0 0.0
        %1400 = vmatpush2.msra.mxu0 0.0
        %1401 = vmatprep.subr.mxu0 0.0
        %1402 = vmatpush2.msra.mxu0 0.0
        %1403 = vmatprep.subr.mxu0 0.0
        %1404 = vmatpush2.msra.mxu0 0.0
        %1405 = vmatprep.subr.mxu0 0.0
        %1406 = vmatpush2.msra.mxu0 0.0
        %1407 = vmatprep.subr.mxu0 0.0
        %1408 = vmatpush2.msra.mxu0 0.0
        %1409 = vmatprep.subr.mxu0 0.0
        %1410 = vmatpush2.msra.mxu0 0.0
        %1411 = vmatprep.subr.mxu0 0.0
        %1412 = vmatpush2.msra.mxu0 0.0
        %1413 = vmatprep.mubr.f32.mxu0 0.0
        %1414 = vmatmul.mubr.f32.gmra.mxu0 %v1347
        %v1415 = vpop.f32.mrf.mxu0
        %v1416 = vadd.f32 0.0, %v1415
        %v1417 = vpop.f32.mrf.mxu0
        %1418 = vdwg.mxu0
        %v1420 = vsel %vm1228, %v1271, 0
        %1422 = vmatprep.subr.mxu0 0.0
        %1423 = vmatpush1.msra.mxu0 0.0
        %1424 = vmatprep.subr.mxu0 0.0
        %1425 = vmatpush1.msra.mxu0 0.0
        %1426 = vmatprep.subr.mxu0 0.0
        %1427 = vmatpush1.msra.mxu0 0.0
        %1428 = vmatprep.subr.mxu0 0.0
        %1429 = vmatpush1.msra.mxu0 0.0
        %1430 = vmatprep.subr.mxu0 0.0
        %1431 = vmatpush1.msra.mxu0 0.0
        %1432 = vmatprep.subr.mxu0 0.0
        %1433 = vmatpush1.msra.mxu0 0.0
        %1434 = vmatprep.subr.mxu0 0.0
        %1435 = vmatpush1.msra.mxu0 0.0
        %1436 = vmatprep.subr.mxu0 0.0
        %1437 = vmatpush1.msra.mxu0 0.0
        %1438 = vmatprep.subr.mxu0 0.0
        %1439 = vmatpush1.msra.mxu0 0.0
        %1440 = vmatprep.subr.mxu0 0.0
        %1441 = vmatpush1.msra.mxu0 0.0
        %1442 = vmatprep.subr.mxu0 0.0
        %1443 = vmatpush1.msra.mxu0 0.0
        %1444 = vmatprep.subr.mxu0 0.0
        %1445 = vmatpush1.msra.mxu0 0.0
        %1446 = vmatprep.subr.mxu0 0.0
        %1447 = vmatpush1.msra.mxu0 0.0
        %1448 = vmatprep.subr.mxu0 0.0
        %1449 = vmatpush1.msra.mxu0 0.0
        %1450 = vmatprep.subr.mxu0 0.0
        %1451 = vmatpush1.msra.mxu0 0.0
        %1452 = vmatprep.subr.mxu0 0.0
        %1453 = vmatpush1.msra.mxu0 %v862
        %1454 = vmatprep.subr.mxu0 0.0
        %1455 = vmatpush2.msra.mxu0 0.0
        %1456 = vmatprep.subr.mxu0 0.0
        %1457 = vmatpush2.msra.mxu0 0.0
        %1458 = vmatprep.subr.mxu0 0.0
        %1459 = vmatpush2.msra.mxu0 0.0
        %1460 = vmatprep.subr.mxu0 0.0
        %1461 = vmatpush2.msra.mxu0 0.0
        %1462 = vmatprep.subr.mxu0 0.0
        %1463 = vmatpush2.msra.mxu0 0.0
        %1464 = vmatprep.subr.mxu0 0.0
        %1465 = vmatpush2.msra.mxu0 0.0
        %1466 = vmatprep.subr.mxu0 0.0
        %1467 = vmatpush2.msra.mxu0 0.0
        %1468 = vmatprep.subr.mxu0 0.0
        %1469 = vmatpush2.msra.mxu0 0.0
        %1470 = vmatprep.subr.mxu0 0.0
        %1471 = vmatpush2.msra.mxu0 0.0
        %1472 = vmatprep.subr.mxu0 0.0
        %1473 = vmatpush2.msra.mxu0 0.0
        %1474 = vmatprep.subr.mxu0 0.0
        %1475 = vmatpush2.msra.mxu0 0.0
        %1476 = vmatprep.subr.mxu0 0.0
        %1477 = vmatpush2.msra.mxu0 0.0
        %1478 = vmatprep.subr.mxu0 0.0
        %1479 = vmatpush2.msra.mxu0 0.0
        %1480 = vmatprep.subr.mxu0 0.0
        %1481 = vmatpush2.msra.mxu0 0.0
        %1482 = vmatprep.subr.mxu0 0.0
        %1483 = vmatpush2.msra.mxu0 0.0
        %1484 = vmatprep.subr.mxu0 0.0
        %1485 = vmatpush2.msra.mxu0 0.0
        %1486 = vmatprep.mubr.f32.mxu0 0.0
        %1487 = vmatmul.mubr.f32.gmra.mxu0 %v1420
        %v1488 = vpop.f32.mrf.mxu0
        %v1489 = vadd.f32 0.0, %v1488
        %v1490 = vpop.f32.mrf.mxu0
        %1491 = vdwg.mxu0
        %v1493 = vsel %vm1228, %v1272, 0
        %1495 = vmatprep.subr.mxu0 0.0
        %1496 = vmatpush1.msra.mxu0 0.0
        %1497 = vmatprep.subr.mxu0 0.0
        %1498 = vmatpush1.msra.mxu0 0.0
        %1499 = vmatprep.subr.mxu0 0.0
        %1500 = vmatpush1.msra.mxu0 0.0
        %1501 = vmatprep.subr.mxu0 0.0
        %1502 = vmatpush1.msra.mxu0 0.0
        %1503 = vmatprep.subr.mxu0 0.0
        %1504 = vmatpush1.msra.mxu0 0.0
        %1505 = vmatprep.subr.mxu0 0.0
        %1506 = vmatpush1.msra.mxu0 0.0
        %1507 = vmatprep.subr.mxu0 0.0
        %1508 = vmatpush1.msra.mxu0 0.0
        %1509 = vmatprep.subr.mxu0 0.0
        %1510 = vmatpush1.msra.mxu0 0.0
        %1511 = vmatprep.subr.mxu0 0.0
        %1512 = vmatpush1.msra.mxu0 0.0
        %1513 = vmatprep.subr.mxu0 0.0
        %1514 = vmatpush1.msra.mxu0 0.0
        %1515 = vmatprep.subr.mxu0 0.0
        %1516 = vmatpush1.msra.mxu0 0.0
        %1517 = vmatprep.subr.mxu0 0.0
        %1518 = vmatpush1.msra.mxu0 0.0
        %1519 = vmatprep.subr.mxu0 0.0
        %1520 = vmatpush1.msra.mxu0 0.0
        %1521 = vmatprep.subr.mxu0 0.0
        %1522 = vmatpush1.msra.mxu0 0.0
        %1523 = vmatprep.subr.mxu0 0.0
        %1524 = vmatpush1.msra.mxu0 0.0
        %1525 = vmatprep.subr.mxu0 0.0
        %1526 = vmatpush1.msra.mxu0 %v932
        %1527 = vmatprep.subr.mxu0 0.0
        %1528 = vmatpush2.msra.mxu0 0.0
        %1529 = vmatprep.subr.mxu0 0.0
        %1530 = vmatpush2.msra.mxu0 0.0
        %1531 = vmatprep.subr.mxu0 0.0
        %1532 = vmatpush2.msra.mxu0 0.0
        %1533 = vmatprep.subr.mxu0 0.0
        %1534 = vmatpush2.msra.mxu0 0.0
        %1535 = vmatprep.subr.mxu0 0.0
        %1536 = vmatpush2.msra.mxu0 0.0
        %1537 = vmatprep.subr.mxu0 0.0
        %1538 = vmatpush2.msra.mxu0 0.0
        %1539 = vmatprep.subr.mxu0 0.0
        %1540 = vmatpush2.msra.mxu0 0.0
        %1541 = vmatprep.subr.mxu0 0.0
        %1542 = vmatpush2.msra.mxu0 0.0
        %1543 = vmatprep.subr.mxu0 0.0
        %1544 = vmatpush2.msra.mxu0 0.0
        %1545 = vmatprep.subr.mxu0 0.0
        %1546 = vmatpush2.msra.mxu0 0.0
        %1547 = vmatprep.subr.mxu0 0.0
        %1548 = vmatpush2.msra.mxu0 0.0
        %1549 = vmatprep.subr.mxu0 0.0
        %1550 = vmatpush2.msra.mxu0 0.0
        %1551 = vmatprep.subr.mxu0 0.0
        %1552 = vmatpush2.msra.mxu0 0.0
        %1553 = vmatprep.subr.mxu0 0.0
        %1554 = vmatpush2.msra.mxu0 0.0
        %1555 = vmatprep.subr.mxu0 0.0
        %1556 = vmatpush2.msra.mxu0 0.0
        %1557 = vmatprep.subr.mxu0 0.0
        %1558 = vmatpush2.msra.mxu0 0.0
        %1559 = vmatprep.mubr.f32.mxu0 0.0
        %1560 = vmatmul.mubr.f32.gmra.mxu0 %v1493
        %v1561 = vpop.f32.mrf.mxu0
        %v1562 = vadd.f32 0.0, %v1561
        %v1563 = vpop.f32.mrf.mxu0
        %1564 = vdwg.mxu0
        %v1566 = vsel %vm935, %v1343, 0
        %1568 = vmatprep.subr.mxu0 0.0
        %1569 = vmatpush1.msra.mxu0 0.0
        %1570 = vmatprep.subr.mxu0 0.0
        %1571 = vmatpush1.msra.mxu0 0.0
        %1572 = vmatprep.subr.mxu0 0.0
        %1573 = vmatpush1.msra.mxu0 0.0
        %1574 = vmatprep.subr.mxu0 0.0
        %1575 = vmatpush1.msra.mxu0 0.0
        %1576 = vmatprep.subr.mxu0 0.0
        %1577 = vmatpush1.msra.mxu0 0.0
        %1578 = vmatprep.subr.mxu0 0.0
        %1579 = vmatpush1.msra.mxu0 0.0
        %1580 = vmatprep.subr.mxu0 0.0
        %1581 = vmatpush1.msra.mxu0 0.0
        %1582 = vmatprep.subr.mxu0 0.0
        %1583 = vmatpush1.msra.mxu0 0.0
        %1584 = vmatprep.subr.mxu0 0.0
        %1585 = vmatpush1.msra.mxu0 0.0
        %1586 = vmatprep.subr.mxu0 0.0
        %1587 = vmatpush1.msra.mxu0 0.0
        %1588 = vmatprep.subr.mxu0 0.0
        %1589 = vmatpush1.msra.mxu0 0.0
        %1590 = vmatprep.subr.mxu0 0.0
        %1591 = vmatpush1.msra.mxu0 0.0
        %1592 = vmatprep.subr.mxu0 0.0
        %1593 = vmatpush1.msra.mxu0 0.0
        %1594 = vmatprep.subr.mxu0 0.0
        %1595 = vmatpush1.msra.mxu0 0.0
        %1596 = vmatprep.subr.mxu0 0.0
        %1597 = vmatpush1.msra.mxu0 %v308
        %1598 = vmatprep.subr.mxu0 0.0
        %1599 = vmatpush1.msra.mxu0 %v307
        %1600 = vmatprep.subr.mxu0 0.0
        %1601 = vmatpush2.msra.mxu0 0.0
        %1602 = vmatprep.subr.mxu0 0.0
        %1603 = vmatpush2.msra.mxu0 0.0
        %1604 = vmatprep.subr.mxu0 0.0
        %1605 = vmatpush2.msra.mxu0 0.0
        %1606 = vmatprep.subr.mxu0 0.0
        %1607 = vmatpush2.msra.mxu0 0.0
        %1608 = vmatprep.subr.mxu0 0.0
        %1609 = vmatpush2.msra.mxu0 0.0
        %1610 = vmatprep.subr.mxu0 0.0
        %1611 = vmatpush2.msra.mxu0 0.0
        %1612 = vmatprep.subr.mxu0 0.0
        %1613 = vmatpush2.msra.mxu0 0.0
        %1614 = vmatprep.subr.mxu0 0.0
        %1615 = vmatpush2.msra.mxu0 0.0
        %1616 = vmatprep.subr.mxu0 0.0
        %1617 = vmatpush2.msra.mxu0 0.0
        %1618 = vmatprep.subr.mxu0 0.0
        %1619 = vmatpush2.msra.mxu0 0.0
        %1620 = vmatprep.subr.mxu0 0.0
        %1621 = vmatpush2.msra.mxu0 0.0
        %1622 = vmatprep.subr.mxu0 0.0
        %1623 = vmatpush2.msra.mxu0 0.0
        %1624 = vmatprep.subr.mxu0 0.0
        %1625 = vmatpush2.msra.mxu0 0.0
        %1626 = vmatprep.subr.mxu0 0.0
        %1627 = vmatpush2.msra.mxu0 0.0
        %1628 = vmatprep.subr.mxu0 0.0
        %1629 = vmatpush2.msra.mxu0 0.0
        %1630 = vmatprep.subr.mxu0 0.0
        %1631 = vmatpush2.msra.mxu0 0.0
        %1632 = vmatprep.mubr.f32.mxu0 0.0
        %1633 = vmatmul.mubr.f32.gmra.mxu0 %v1566
        %v1634 = vpop.f32.mrf.mxu0
        %v1635 = vadd.f32 0.0, %v1634
        %v1636 = vpop.f32.mrf.mxu0
        %1637 = vdwg.mxu0
        %v1639 = vsel %vm935, %v1416, 0
        %1641 = vmatprep.subr.mxu0 0.0
        %1642 = vmatpush1.msra.mxu0 0.0
        %1643 = vmatprep.subr.mxu0 0.0
        %1644 = vmatpush1.msra.mxu0 0.0
        %1645 = vmatprep.subr.mxu0 0.0
        %1646 = vmatpush1.msra.mxu0 0.0
        %1647 = vmatprep.subr.mxu0 0.0
        %1648 = vmatpush1.msra.mxu0 0.0
        %1649 = vmatprep.subr.mxu0 0.0
        %1650 = vmatpush1.msra.mxu0 0.0
        %1651 = vmatprep.subr.mxu0 0.0
        %1652 = vmatpush1.msra.mxu0 0.0
        %1653 = vmatprep.subr.mxu0 0.0
        %1654 = vmatpush1.msra.mxu0 0.0
        %1655 = vmatprep.subr.mxu0 0.0
        %1656 = vmatpush1.msra.mxu0 0.0
        %1657 = vmatprep.subr.mxu0 0.0
        %1658 = vmatpush1.msra.mxu0 0.0
        %1659 = vmatprep.subr.mxu0 0.0
        %1660 = vmatpush1.msra.mxu0 0.0
        %1661 = vmatprep.subr.mxu0 0.0
        %1662 = vmatpush1.msra.mxu0 0.0
        %1663 = vmatprep.subr.mxu0 0.0
        %1664 = vmatpush1.msra.mxu0 0.0
        %1665 = vmatprep.subr.mxu0 0.0
        %1666 = vmatpush1.msra.mxu0 0.0
        %1667 = vmatprep.subr.mxu0 0.0
        %1668 = vmatpush1.msra.mxu0 0.0
        %1669 = vmatprep.subr.mxu0 0.0
        %1670 = vmatpush1.msra.mxu0 %v310
        %1671 = vmatprep.subr.mxu0 0.0
        %1672 = vmatpush1.msra.mxu0 %v309
        %1673 = vmatprep.subr.mxu0 0.0
        %1674 = vmatpush2.msra.mxu0 0.0
        %1675 = vmatprep.subr.mxu0 0.0
        %1676 = vmatpush2.msra.mxu0 0.0
        %1677 = vmatprep.subr.mxu0 0.0
        %1678 = vmatpush2.msra.mxu0 0.0
        %1679 = vmatprep.subr.mxu0 0.0
        %1680 = vmatpush2.msra.mxu0 0.0
        %1681 = vmatprep.subr.mxu0 0.0
        %1682 = vmatpush2.msra.mxu0 0.0
        %1683 = vmatprep.subr.mxu0 0.0
        %1684 = vmatpush2.msra.mxu0 0.0
        %1685 = vmatprep.subr.mxu0 0.0
        %1686 = vmatpush2.msra.mxu0 0.0
        %1687 = vmatprep.subr.mxu0 0.0
        %1688 = vmatpush2.msra.mxu0 0.0
        %1689 = vmatprep.subr.mxu0 0.0
        %1690 = vmatpush2.msra.mxu0 0.0
        %1691 = vmatprep.subr.mxu0 0.0
        %1692 = vmatpush2.msra.mxu0 0.0
        %1693 = vmatprep.subr.mxu0 0.0
        %1694 = vmatpush2.msra.mxu0 0.0
        %1695 = vmatprep.subr.mxu0 0.0
        %1696 = vmatpush2.msra.mxu0 0.0
        %1697 = vmatprep.subr.mxu0 0.0
        %1698 = vmatpush2.msra.mxu0 0.0
        %1699 = vmatprep.subr.mxu0 0.0
        %1700 = vmatpush2.msra.mxu0 0.0
        %1701 = vmatprep.subr.mxu0 0.0
        %1702 = vmatpush2.msra.mxu0 0.0
        %1703 = vmatprep.subr.mxu0 0.0
        %1704 = vmatpush2.msra.mxu0 0.0
        %1705 = vmatprep.mubr.f32.mxu0 0.0
        %1706 = vmatmul.mubr.f32.gmra.mxu0 %v1639
        %v1707 = vpop.f32.mrf.mxu0
        %v1708 = vadd.f32 0.0, %v1707
        %v1709 = vpop.f32.mrf.mxu0
        %1710 = vdwg.mxu0
        %v1712 = vsel %vm935, %v1489, 0
        %1714 = vmatprep.subr.mxu0 0.0
        %1715 = vmatpush1.msra.mxu0 0.0
        %1716 = vmatprep.subr.mxu0 0.0
        %1717 = vmatpush1.msra.mxu0 0.0
        %1718 = vmatprep.subr.mxu0 0.0
        %1719 = vmatpush1.msra.mxu0 0.0
        %1720 = vmatprep.subr.mxu0 0.0
        %1721 = vmatpush1.msra.mxu0 0.0
        %1722 = vmatprep.subr.mxu0 0.0
        %1723 = vmatpush1.msra.mxu0 0.0
        %1724 = vmatprep.subr.mxu0 0.0
        %1725 = vmatpush1.msra.mxu0 0.0
        %1726 = vmatprep.subr.mxu0 0.0
        %1727 = vmatpush1.msra.mxu0 0.0
        %1728 = vmatprep.subr.mxu0 0.0
        %1729 = vmatpush1.msra.mxu0 0.0
        %1730 = vmatprep.subr.mxu0 0.0
        %1731 = vmatpush1.msra.mxu0 0.0
        %1732 = vmatprep.subr.mxu0 0.0
        %1733 = vmatpush1.msra.mxu0 0.0
        %1734 = vmatprep.subr.mxu0 0.0
        %1735 = vmatpush1.msra.mxu0 0.0
        %1736 = vmatprep.subr.mxu0 0.0
        %1737 = vmatpush1.msra.mxu0 0.0
        %1738 = vmatprep.subr.mxu0 0.0
        %1739 = vmatpush1.msra.mxu0 0.0
        %1740 = vmatprep.subr.mxu0 0.0
        %1741 = vmatpush1.msra.mxu0 0.0
        %1742 = vmatprep.subr.mxu0 0.0
        %1743 = vmatpush1.msra.mxu0 %v312
        %1744 = vmatprep.subr.mxu0 0.0
        %1745 = vmatpush1.msra.mxu0 %v311
        %1746 = vmatprep.subr.mxu0 0.0
        %1747 = vmatpush2.msra.mxu0 0.0
        %1748 = vmatprep.subr.mxu0 0.0
        %1749 = vmatpush2.msra.mxu0 0.0
        %1750 = vmatprep.subr.mxu0 0.0
        %1751 = vmatpush2.msra.mxu0 0.0
        %1752 = vmatprep.subr.mxu0 0.0
        %1753 = vmatpush2.msra.mxu0 0.0
        %1754 = vmatprep.subr.mxu0 0.0
        %1755 = vmatpush2.msra.mxu0 0.0
        %1756 = vmatprep.subr.mxu0 0.0
        %1757 = vmatpush2.msra.mxu0 0.0
        %1758 = vmatprep.subr.mxu0 0.0
        %1759 = vmatpush2.msra.mxu0 0.0
        %1760 = vmatprep.subr.mxu0 0.0
        %1761 = vmatpush2.msra.mxu0 0.0
        %1762 = vmatprep.subr.mxu0 0.0
        %1763 = vmatpush2.msra.mxu0 0.0
        %1764 = vmatprep.subr.mxu0 0.0
        %1765 = vmatpush2.msra.mxu0 0.0
        %1766 = vmatprep.subr.mxu0 0.0
        %1767 = vmatpush2.msra.mxu0 0.0
        %1768 = vmatprep.subr.mxu0 0.0
        %1769 = vmatpush2.msra.mxu0 0.0
        %1770 = vmatprep.subr.mxu0 0.0
        %1771 = vmatpush2.msra.mxu0 0.0
        %1772 = vmatprep.subr.mxu0 0.0
        %1773 = vmatpush2.msra.mxu0 0.0
        %1774 = vmatprep.subr.mxu0 0.0
        %1775 = vmatpush2.msra.mxu0 0.0
        %1776 = vmatprep.subr.mxu0 0.0
        %1777 = vmatpush2.msra.mxu0 0.0
        %1778 = vmatprep.mubr.f32.mxu0 0.0
        %1779 = vmatmul.mubr.f32.gmra.mxu0 %v1712
        %v1780 = vpop.f32.mrf.mxu0
        %v1781 = vadd.f32 0.0, %v1780
        %v1782 = vpop.f32.mrf.mxu0
        %1783 = vdwg.mxu0
        %v1785 = vsel %vm935, %v1562, 0
        %1787 = vmatprep.subr.mxu0 0.0
        %1788 = vmatpush1.msra.mxu0 0.0
        %1789 = vmatprep.subr.mxu0 0.0
        %1790 = vmatpush1.msra.mxu0 0.0
        %1791 = vmatprep.subr.mxu0 0.0
        %1792 = vmatpush1.msra.mxu0 0.0
        %1793 = vmatprep.subr.mxu0 0.0
        %1794 = vmatpush1.msra.mxu0 0.0
        %1795 = vmatprep.subr.mxu0 0.0
        %1796 = vmatpush1.msra.mxu0 0.0
        %1797 = vmatprep.subr.mxu0 0.0
        %1798 = vmatpush1.msra.mxu0 0.0
        %1799 = vmatprep.subr.mxu0 0.0
        %1800 = vmatpush1.msra.mxu0 0.0
        %1801 = vmatprep.subr.mxu0 0.0
        %1802 = vmatpush1.msra.mxu0 0.0
        %1803 = vmatprep.subr.mxu0 0.0
        %1804 = vmatpush1.msra.mxu0 0.0
        %1805 = vmatprep.subr.mxu0 0.0
        %1806 = vmatpush1.msra.mxu0 0.0
        %1807 = vmatprep.subr.mxu0 0.0
        %1808 = vmatpush1.msra.mxu0 0.0
        %1809 = vmatprep.subr.mxu0 0.0
        %1810 = vmatpush1.msra.mxu0 0.0
        %1811 = vmatprep.subr.mxu0 0.0
        %1812 = vmatpush1.msra.mxu0 0.0
        %1813 = vmatprep.subr.mxu0 0.0
        %1814 = vmatpush1.msra.mxu0 0.0
        %1815 = vmatprep.subr.mxu0 0.0
        %1816 = vmatpush1.msra.mxu0 %v314
        %1817 = vmatprep.subr.mxu0 0.0
        %1818 = vmatpush1.msra.mxu0 %v313
        %1819 = vmatprep.subr.mxu0 0.0
        %1820 = vmatpush2.msra.mxu0 0.0
        %1821 = vmatprep.subr.mxu0 0.0
        %1822 = vmatpush2.msra.mxu0 0.0
        %1823 = vmatprep.subr.mxu0 0.0
        %1824 = vmatpush2.msra.mxu0 0.0
        %1825 = vmatprep.subr.mxu0 0.0
        %1826 = vmatpush2.msra.mxu0 0.0
        %1827 = vmatprep.subr.mxu0 0.0
        %1828 = vmatpush2.msra.mxu0 0.0
        %1829 = vmatprep.subr.mxu0 0.0
        %1830 = vmatpush2.msra.mxu0 0.0
        %1831 = vmatprep.subr.mxu0 0.0
        %1832 = vmatpush2.msra.mxu0 0.0
        %1833 = vmatprep.subr.mxu0 0.0
        %1834 = vmatpush2.msra.mxu0 0.0
        %1835 = vmatprep.subr.mxu0 0.0
        %1836 = vmatpush2.msra.mxu0 0.0
        %1837 = vmatprep.subr.mxu0 0.0
        %1838 = vmatpush2.msra.mxu0 0.0
        %1839 = vmatprep.subr.mxu0 0.0
        %1840 = vmatpush2.msra.mxu0 0.0
        %1841 = vmatprep.subr.mxu0 0.0
        %1842 = vmatpush2.msra.mxu0 0.0
        %1843 = vmatprep.subr.mxu0 0.0
        %1844 = vmatpush2.msra.mxu0 0.0
        %1845 = vmatprep.subr.mxu0 0.0
        %1846 = vmatpush2.msra.mxu0 0.0
        %1847 = vmatprep.subr.mxu0 0.0
        %1848 = vmatpush2.msra.mxu0 0.0
        %1849 = vmatprep.subr.mxu0 0.0
        %1850 = vmatpush2.msra.mxu0 0.0
        %1851 = vmatprep.mubr.f32.mxu0 0.0
        %1852 = vmatmul.mubr.f32.gmra.mxu0 %v1785
        %v1853 = vpop.f32.mrf.mxu0
        %v1854 = vadd.f32 0.0, %v1853
        %v1855 = vpop.f32.mrf.mxu0
        %1856 = vdwg.mxu0
        %v1857 = vsel %vm347, %v1635, 0.0
        %v1858 = vsel %vm347, %v1708, 0.0
        %v1859 = vadd.f32 %v1857, %v1858
        %v1860 = vsel %vm347, %v1781, 0.0
        %v1861 = vadd.f32 %v1859, %v1860
        %v1862 = vsel %vm347, %v1854, 0.0
        %v1863 = vadd.f32 %v1861, %v1862
        %v1864 = vld [vmem:[%s6] sm:$0x1]
        %v1866 = vlaneseq
        %v1867 = vshrl.u32 %v1866, 7
        %v1868 = vsub.s32 0, %v1867
        %v1869 = vrot.slane %v1864, %v1868
        %v1871 = vadd.f32 %v1863, %v1869
        %1872 = vst.msk [vmem:[%s269] sm:$0xff] %vm347, %v1871
        %s1873 = sand.u32 %s181, 1
        %s1874 = scalar_lea.sflag [#allocation3], %s1873
        %s1875 = sand.u32 %s181, 1
        %s1876 = smul.addr %s1875, 8
        %s1877 = scalar_lea.vmem [#allocation2], %s1876
        // Predicated region
        $region49: #{tpu_custom_call.1} parent=47 // pred_check
          %p1878 = pneg %p191
        $region50: #{tpu_custom_call.1} parent=47 // pred_check_branch
          %1880 = sbr.rel (%p1878) target = $region52
        $region51: #{tpu_custom_call.1} parent=47 // pred_region
          %s1882 = ssub.s32 128, 128
          %1883 = vsyncadd %s1874, %s1882
          %s1884 = smul.addr %s21, 128
          %s1885 = scalar_lea.hbm %s7, %s1884
          %s1887 = sshll.u32 %s1877, 4
          %s1888 = int_to_ptr.vmem [resolvable:$true] %s1887
          %1890 = dma.vmem_to_hbm [thread:$0]  %s1888, 128, %s1885, %s1874
        $region52: #{tpu_custom_call.1} parent=47 // pred_fallthru
          _
      $region48: #{tpu_custom_call.1} parent=5 // pred_fallthru
        _
      %p1891 = scmp.le.s32.totalorder 2, %s16
      // Predicated region
      $region53: #{tpu_custom_call.1} parent=5 // pred_check
        %p1892 = pneg %p1891
      $region54: #{tpu_custom_call.1} parent=5 // pred_check_branch
        %1894 = sbr.rel (%p1892) target = $region56
      $region55: #{tpu_custom_call.1} parent=5 // pred_region
        %s1895 = ssub.s32 %s16, 2
        // Predicated region
        $region57: #{tpu_custom_call.1} parent=55 // pred_check
          %p1896 = pneg %p197
        $region58: #{tpu_custom_call.1} parent=55 // pred_check_branch
          %1898 = sbr.rel (%p1896) target = $region60
        $region59: #{tpu_custom_call.1} parent=55 // pred_region
          %s1899 = sand.u32 %s182, 1
          %s1900 = scalar_lea.sflag [#allocation3], %s1899
          %s1901 = sand.u32 %s182, 1
          %s1902 = smul.addr %s1901, 8
          %s1903 = scalar_lea.vmem [#allocation2], %s1902
          %1904 = dma.done %s1900, 128
        $region60: #{tpu_custom_call.1} parent=55 // pred_fallthru
          _
      $region56: #{tpu_custom_call.1} parent=5 // pred_fallthru
        _
    $region6: #{tpu_custom_call.1} parent=1 // loop_footer
      %s20 = sadd.s32 1, %s16
    $region7: #{tpu_custom_call.1} parent=1 // loop_footer_branch
      %15 = sbr.rel target = $region3
    $region8: #{tpu_custom_call.1} parent=1 // loop_exit
      _
    %1905 = vsyncpa [#allocation3], 1
    %s1906 = scalar_lea.sflag [#allocation3], 1
    %1907 = vsyncpa %s1906, 1

</llo_original>
